<compile_context>
chip_gen: v7x
topology: tpu7x:2x2x1
jax: 0.10.0
libtpu: 0.0.40
codegen_flags: <defaults>
</compile_context>

<pallas_src>
import math
import numpy as np
import jax
import jax.numpy as jnp
from jax import lax
from jax.experimental import pallas as pl
from jax.experimental.pallas import tpu as pltpu

_POOL_SIZES = (1, 2, 3)
_N_POOL = sum(k * k for k in _POOL_SIZES)          # 14 pooled positions per pool mode
_BN_EPS = 1e-5
_BN_INV = 1.0 / math.sqrt(1.0 + _BN_EPS)           # inference BN, running_var = 1
_KS = 7
_PAD = (_KS - 1) // 2
_NEG = -3.0e38                                     # "-inf" for masked max


# ----------------------------- fused kernel -----------------------------
def _make_fused_kernel(C, H, W):
    HW = H * W
    inv_area = []                                   # static per-block 1/(bh*bw), (k,i,j) order
    for k in _POOL_SIZES:
        bh, bw = H // k, W // k
        inv_area += [1.0 / (bh * bw)] * (k * k)

    def kernel(xf_ref, masks_ref, w1_ref, w2_ref, betac_ref, convmat_ref,
               eye_ref, betas_ref, id_ref, age_ref):
        xf = xf_ref[...]                            # (C, HW)  lane-dense view of x[b]
        masks = masks_ref[...]                      # (14, HW) 0/1 block masks

        # ---- SPP pooling (avg & max) as lane-masked reductions, kept in registers ----
        avg_parts, max_parts = [], []
        for r in range(_N_POOL):
            m = masks[r:r + 1, :]                   # (1, HW)
            s = jnp.sum(xf * m, axis=1) * inv_area[r]       # (C,)  block mean
            avg_parts.append(s[None, :])                    # (1, C)
            xm = jnp.where(m > 0.5, xf, _NEG)
            max_parts.append(jnp.max(xm, axis=1)[None, :])  # (1, C) block max
        pooled = jnp.concatenate(avg_parts + max_parts, axis=1)   # (1, 28*C)

        # ---- channel branch: 1x1 convs as MXU matmuls, BN gamma folded into w2 ----
        h = jnp.dot(pooled, w1_ref[...], preferred_element_type=jnp.float32)
        h = jnp.maximum(h, 0.0)
        y = jnp.dot(h, w2_ref[...], preferred_element_type=jnp.float32)
        cs = jax.nn.sigmoid(y + betac_ref[...])             # (1, C) channel scale

        # ---- spatial branch: channel max/mean + 7x7 conv as one dense matmul ----
        xmax = jnp.max(xf, axis=0, keepdims=True)           # (1, HW)
        xmean = jnp.mean(xf, axis=0, keepdims=True)         # (1, HW)
        splane = jnp.concatenate([xmax, xmean], axis=1)     # (1, 2*HW)
        conv = jnp.dot(splane, convmat_ref[...], preferred_element_type=jnp.float32)
        ss = jax.nn.sigmoid(conv + betas_ref[0])            # (1, HW) spatial scale

        # ---- combine: scale = 0.5*(cs + ss).  diag(cs) @ xf broadcasts the
        #      lane-resident channel scale across channel rows via the MXU. ----
        diag_cs = eye_ref[...] * cs                         # (C, C)
        ch_scaled = jnp.dot(diag_cs, xf, preferred_element_type=jnp.float32)
        age = 0.5 * (xf * ss + ch_scaled)
        age_ref[...] = age
        id_ref[...] = xf - age

    return kernel


# ----------------------------- host-side helpers -----------------------------
def build_perm(C):
    """Map kernel pooled layout (block-major, channel-minor) -> PyTorch channel_input index."""
    perm = np.zeros(2 * _N_POOL * C, dtype=np.int64)
    bases, off = [], 0
    for _ in range(2):                               # avg segments, then max segments
        for k in _POOL_SIZES:
            bases.append((k, off))
            off += C * k * k
    r = 0
    for k, base in bases:
        for p in range(k * k):
            for c in range(C):
                perm[r * C + c] = base + c * k * k + p
            r += 1
    return perm


def build_pool_masks(H, W):
    """(14, H*W) 0/1 masks, one per (k, i, j) pooling block, in kernel enumeration order."""
    masks = np.zeros((_N_POOL, H * W), np.float32)
    r = 0
    for k in _POOL_SIZES:
        bh, bw = H // k, W // k
        for i in range(k):
            for j in range(k):
                m = np.zeros((H, W), np.float32)
                m[i * bh:(i + 1) * bh, j * bw:(j + 1) * bw] = 1.0
                masks[r] = m.reshape(-1)
                r += 1
    return masks


def build_conv_matrix(w_sp, gamma_s, H, W):
    """Dense (2*H*W, H*W) matrix implementing the padded 7x7 (2->1 ch) conv, BN gamma folded."""
    HW = H * W
    M = np.zeros((2 * HW, HW), np.float32)
    w = np.asarray(w_sp).reshape(2, _KS, _KS)
    for ch in range(2):
        for ho in range(H):
            for wo in range(W):
                o = ho * W + wo
                for kh in range(_KS):
                    for kw in range(_KS):
                        hi, wi = ho + kh - _PAD, wo + kw - _PAD
                        if 0 <= hi < H and 0 <= wi < W:
                            M[ch * HW + hi * W + wi, o] = w[ch, kh, kw]
    return M * (float(gamma_s) * _BN_INV)


def attention_forward(x, w1_k, w2_k, beta_c, convmat, bn_beta_s):
    B, C, H, W = x.shape
    HW = H * W
    for k in _POOL_SIZES:
        assert H % k == 0 and W % k == 0, "H, W must be divisible by pool sizes (1,2,3)"
    n_flat = 2 * _N_POOL * C
    hidden = w1_k.shape[1]

    xf = x.reshape(B, C, HW)                                  # lane-dense view
    masks = jnp.asarray(build_pool_masks(H, W))               # (14, HW) constant
    eye = jnp.eye(C, dtype=jnp.float32)                       # (C, C) constant

    kern = _make_fused_kernel(C, H, W)
    x_id, x_age = pl.pallas_call(
        kern,
        out_shape=(jax.ShapeDtypeStruct((B, C, HW), jnp.float32),
                   jax.ShapeDtypeStruct((B, C, HW), jnp.float32)),
        grid=(B,),
        in_specs=[
            pl.BlockSpec((None, C, HW), lambda b: (b, 0, 0)),          # x (flat view)
            pl.BlockSpec((_N_POOL, HW), lambda b: (0, 0)),             # pooling masks
            pl.BlockSpec((n_flat, hidden), lambda b: (0, 0)),          # w1 (perm'd)
            pl.BlockSpec((hidden, C), lambda b: (0, 0)),               # w2 (BN folded)
            pl.BlockSpec((1, C), lambda b: (0, 0)),                    # channel BN beta
            pl.BlockSpec((2 * HW, HW), lambda b: (0, 0)),              # conv matrix
            pl.BlockSpec((C, C), lambda b: (0, 0)),                    # identity
            pl.BlockSpec(memory_space=pltpu.MemorySpace.SMEM),         # spatial BN beta
        ],
        out_specs=(pl.BlockSpec((None, C, HW), lambda b: (b, 0, 0)),
                   pl.BlockSpec((None, C, HW), lambda b: (b, 0, 0))),
        compiler_params=pltpu.CompilerParams(dimension_semantics=("parallel",)),
    )(xf, masks, w1_k, w2_k, beta_c, convmat, eye, bn_beta_s)
    return x_id.reshape(B, C, H, W), x_age.reshape(B, C, H, W)


# ------------- pure-JAX reference (mirrors PyTorch forward, eval-mode BN) -------------
def reference_forward(x, w1, w2, gamma_c, beta_c, w_sp, gamma_s, beta_s):
    B, C, H, W = x.shape

    def spp(xx, mode):
        outs = []
        for k in _POOL_SIZES:
            xr = xx.reshape(B, C, k, H // k, k, W // k)
            p = xr.mean(axis=(3, 5)) if mode == 'avg' else xr.max(axis=(3, 5))
            outs.append(p.reshape(B, C * k * k))
        return jnp.concatenate(outs, axis=1)

    ci = jnp.concatenate([spp(x, 'avg'), spp(x, 'max')], axis=1)        # (B, 28C)
    h = jnp.maximum(ci @ w1.T, 0.0)
    y = h @ w2.T
    cs = jax.nn.sigmoid(gamma_c * y * _BN_INV + beta_c)                 # (B, C)
    sp = jnp.stack([x.max(axis=1), x.mean(axis=1)], axis=1)             # (B, 2, H, W)
    conv = lax.conv_general_dilated(sp, w_sp, (1, 1),
                                    [(_PAD, _PAD), (_PAD, _PAD)],
                                    dimension_numbers=('NCHW', 'OIHW', 'NCHW'))
    ss = jax.nn.sigmoid(gamma_s * conv * _BN_INV + beta_s)              # (B, 1, H, W)
    scale = (cs[:, :, None, None] + ss) * 0.5
    x_age = x * scale
    return x - x_age, x_age


if __name__ == "__main__":
    B, C, H, W = 2, 16, 12, 12          # small shapes; H, W divisible by pool sizes
    reduction = 16
    n_flat = 2 * _N_POOL * C            # _channels = channels * 14 * 2 = 448
    hidden = n_flat // reduction        # 28

    key = jax.random.PRNGKey(0)
    kx, k1, k2, k3 = jax.random.split(key, 4)
    x = jax.random.normal(kx, (B, C, H, W), jnp.float32)
    w1 = jax.random.normal(k1, (hidden, n_flat), jnp.float32) * 0.05    # 1x1 conv #1
    w2 = jax.random.normal(k2, (C, hidden), jnp.float32) * 0.05         # 1x1 conv #2
    w_sp = jax.random.normal(k3, (1, 2, _KS, _KS), jnp.float32) * 0.1   # 7x7 conv
    gamma_c = jnp.ones((1, C), jnp.float32)     # BatchNorm default affine init
    beta_c = jnp.zeros((1, C), jnp.float32)
    gamma_s, beta_s = 1.0, 0.0

    # Host-side weight prep: permute conv1 columns to the kernel's pooled layout,
    # fold BN gammas (inference-mode) into w2 and the dense conv matrix.
    perm = build_perm(C)
    w1_k = jnp.asarray(np.asarray(w1)[:, perm].T)            # (448, hidden)
    w2_k = jnp.asarray(w2.T * (gamma_c * _BN_INV))           # (hidden, C), gamma folded
    convmat = jnp.asarray(build_conv_matrix(w_sp, gamma_s, H, W))   # (2HW, HW)
    bn_beta_s = jnp.array([beta_s], jnp.float32)

    fwd = jax.jit(attention_forward)
    x_id, x_age = fwd(x, w1_k, w2_k, beta_c, convmat, bn_beta_s)
    jax.block_until_ready((x_id, x_age))

    ref_id, ref_age = reference_forward(x, w1, w2, gamma_c, beta_c, w_sp, gamma_s, beta_s)
    np.testing.assert_allclose(np.asarray(x_age), np.asarray(ref_age), rtol=2e-3, atol=2e-3)
    np.testing.assert_allclose(np.asarray(x_id), np.asarray(ref_id), rtol=2e-3, atol=2e-3)
    print("KERNEL_OK")
</pallas_src>

<mosaic_0001>
module attributes {stable_mosaic.version = 11 : i64} {
  func.func @kernel(%arg0: i32, %arg1: memref<1x16x144xf32, #tpu.memory_space<vmem>>, %arg2: memref<14x144xf32, #tpu.memory_space<vmem>>, %arg3: memref<448x28xf32, #tpu.memory_space<vmem>>, %arg4: memref<28x16xf32, #tpu.memory_space<vmem>>, %arg5: memref<1x16xf32, #tpu.memory_space<vmem>>, %arg6: memref<288x144xf32, #tpu.memory_space<vmem>>, %arg7: memref<16x16xf32, #tpu.memory_space<vmem>>, %arg8: memref<1xf32, #tpu.memory_space<smem>>, %arg9: memref<1x16x144xf32, #tpu.memory_space<vmem>>, %arg10: memref<1x16x144xf32, #tpu.memory_space<vmem>>) attributes {dimension_semantics = [#tpu.dimension_semantics<parallel>], iteration_bounds = array<i64: 2>, scalar_prefetch = 0 : i64, scratch_operands = 0 : i64, tpu.core_type = #tpu.core_type<tc>, window_params = [{transform_indices = @transform_0, window_bounds = array<i64: 1, 16, 144>}, {pipeline_mode = #tpu.pipeline_mode<synchronous>, transform_indices = @transform_1, window_bounds = array<i64: 14, 144>}, {pipeline_mode = #tpu.pipeline_mode<synchronous>, transform_indices = @transform_2, window_bounds = array<i64: 448, 28>}, {pipeline_mode = #tpu.pipeline_mode<synchronous>, transform_indices = @transform_3, window_bounds = array<i64: 28, 16>}, {pipeline_mode = #tpu.pipeline_mode<synchronous>, transform_indices = @transform_4, window_bounds = array<i64: 1, 16>}, {pipeline_mode = #tpu.pipeline_mode<synchronous>, transform_indices = @transform_5, window_bounds = array<i64: 288, 144>}, {pipeline_mode = #tpu.pipeline_mode<synchronous>, transform_indices = @transform_6, window_bounds = array<i64: 16, 16>}, {transform_indices = @transform_7, window_bounds = array<i64: 1>}, {transform_indices = @transform_8, window_bounds = array<i64: 1, 16, 144>}, {transform_indices = @transform_9, window_bounds = array<i64: 1, 16, 144>}]} {
    %c0 = arith.constant 0 : index
    %c0_0 = arith.constant 0 : index
    %c0_1 = arith.constant 0 : index
    %0 = vector.load %arg1[%c0, %c0_0, %c0_1] : memref<1x16x144xf32, #tpu.memory_space<vmem>>, vector<1x16x144xf32>
    %1 = vector.shape_cast %0 : vector<1x16x144xf32> to vector<16x144xf32>
    %c0_2 = arith.constant 0 : index
    %c0_3 = arith.constant 0 : index
    %2 = vector.load %arg2[%c0_2, %c0_3] : memref<14x144xf32, #tpu.memory_space<vmem>>, vector<14x144xf32>
    %3 = vector.extract_strided_slice %2 {offsets = [0, 0], sizes = [1, 144], strides = [1, 1]} : vector<14x144xf32> to vector<1x144xf32>
    %4 = vector.broadcast %3 : vector<1x144xf32> to vector<16x144xf32>
    %5 = arith.mulf %1, %4 : vector<16x144xf32>
    %cst = arith.constant dense<0.000000e+00> : vector<16xf32>
    %6 = vector.multi_reduction <add>, %5, %cst [1] : vector<16x144xf32> to vector<16xf32>
    %cst_4 = arith.constant 0.0069444445 : f32
    %7 = vector.broadcast %cst_4 : f32 to vector<16xf32>
    %8 = arith.mulf %6, %7 : vector<16xf32>
    %9 = vector.shape_cast %8 : vector<16xf32> to vector<1x16xf32>
    %cst_5 = arith.constant 5.000000e-01 : f32
    %10 = vector.broadcast %cst_5 : f32 to vector<1x144xf32>
    %11 = arith.cmpf ogt, %3, %10 : vector<1x144xf32>
    %cst_6 = arith.constant -3.000000e+38 : f32
    %12 = vector.shape_cast %11 : vector<1x144xi1> to vector<1x144xi1>
    %13 = vector.broadcast %12 : vector<1x144xi1> to vector<16x144xi1>
    %14 = vector.broadcast %cst_6 : f32 to vector<16x144xf32>
    %15 = arith.select %13, %1, %14 : vector<16x144xi1>, vector<16x144xf32>
    %cst_7 = arith.constant dense<0xFF800000> : vector<16xf32>
    %16 = vector.multi_reduction <maximumf>, %15, %cst_7 [1] : vector<16x144xf32> to vector<16xf32>
    %17 = vector.shape_cast %16 : vector<16xf32> to vector<1x16xf32>
    %18 = vector.extract_strided_slice %2 {offsets = [1, 0], sizes = [1, 144], strides = [1, 1]} : vector<14x144xf32> to vector<1x144xf32>
    %19 = vector.broadcast %18 : vector<1x144xf32> to vector<16x144xf32>
    %20 = arith.mulf %1, %19 : vector<16x144xf32>
    %cst_8 = arith.constant dense<0.000000e+00> : vector<16xf32>
    %21 = vector.multi_reduction <add>, %20, %cst_8 [1] : vector<16x144xf32> to vector<16xf32>
    %cst_9 = arith.constant 0.027777778 : f32
    %22 = vector.broadcast %cst_9 : f32 to vector<16xf32>
    %23 = arith.mulf %21, %22 : vector<16xf32>
    %24 = vector.shape_cast %23 : vector<16xf32> to vector<1x16xf32>
    %cst_10 = arith.constant 5.000000e-01 : f32
    %25 = vector.broadcast %cst_10 : f32 to vector<1x144xf32>
    %26 = arith.cmpf ogt, %18, %25 : vector<1x144xf32>
    %cst_11 = arith.constant -3.000000e+38 : f32
    %27 = vector.shape_cast %26 : vector<1x144xi1> to vector<1x144xi1>
    %28 = vector.broadcast %27 : vector<1x144xi1> to vector<16x144xi1>
    %29 = vector.broadcast %cst_11 : f32 to vector<16x144xf32>
    %30 = arith.select %28, %1, %29 : vector<16x144xi1>, vector<16x144xf32>
    %cst_12 = arith.constant dense<0xFF800000> : vector<16xf32>
    %31 = vector.multi_reduction <maximumf>, %30, %cst_12 [1] : vector<16x144xf32> to vector<16xf32>
    %32 = vector.shape_cast %31 : vector<16xf32> to vector<1x16xf32>
    %33 = vector.extract_strided_slice %2 {offsets = [2, 0], sizes = [1, 144], strides = [1, 1]} : vector<14x144xf32> to vector<1x144xf32>
    %34 = vector.broadcast %33 : vector<1x144xf32> to vector<16x144xf32>
    %35 = arith.mulf %1, %34 : vector<16x144xf32>
    %cst_13 = arith.constant dense<0.000000e+00> : vector<16xf32>
    %36 = vector.multi_reduction <add>, %35, %cst_13 [1] : vector<16x144xf32> to vector<16xf32>
    %cst_14 = arith.constant 0.027777778 : f32
    %37 = vector.broadcast %cst_14 : f32 to vector<16xf32>
    %38 = arith.mulf %36, %37 : vector<16xf32>
    %39 = vector.shape_cast %38 : vector<16xf32> to vector<1x16xf32>
    %cst_15 = arith.constant 5.000000e-01 : f32
    %40 = vector.broadcast %cst_15 : f32 to vector<1x144xf32>
    %41 = arith.cmpf ogt, %33, %40 : vector<1x144xf32>
    %cst_16 = arith.constant -3.000000e+38 : f32
    %42 = vector.shape_cast %41 : vector<1x144xi1> to vector<1x144xi1>
    %43 = vector.broadcast %42 : vector<1x144xi1> to vector<16x144xi1>
    %44 = vector.broadcast %cst_16 : f32 to vector<16x144xf32>
    %45 = arith.select %43, %1, %44 : vector<16x144xi1>, vector<16x144xf32>
    %cst_17 = arith.constant dense<0xFF800000> : vector<16xf32>
    %46 = vector.multi_reduction <maximumf>, %45, %cst_17 [1] : vector<16x144xf32> to vector<16xf32>
    %47 = vector.shape_cast %46 : vector<16xf32> to vector<1x16xf32>
    %48 = vector.extract_strided_slice %2 {offsets = [3, 0], sizes = [1, 144], strides = [1, 1]} : vector<14x144xf32> to vector<1x144xf32>
    %49 = vector.broadcast %48 : vector<1x144xf32> to vector<16x144xf32>
    %50 = arith.mulf %1, %49 : vector<16x144xf32>
    %cst_18 = arith.constant dense<0.000000e+00> : vector<16xf32>
    %51 = vector.multi_reduction <add>, %50, %cst_18 [1] : vector<16x144xf32> to vector<16xf32>
    %cst_19 = arith.constant 0.027777778 : f32
    %52 = vector.broadcast %cst_19 : f32 to vector<16xf32>
    %53 = arith.mulf %51, %52 : vector<16xf32>
    %54 = vector.shape_cast %53 : vector<16xf32> to vector<1x16xf32>
    %cst_20 = arith.constant 5.000000e-01 : f32
    %55 = vector.broadcast %cst_20 : f32 to vector<1x144xf32>
    %56 = arith.cmpf ogt, %48, %55 : vector<1x144xf32>
    %cst_21 = arith.constant -3.000000e+38 : f32
    %57 = vector.shape_cast %56 : vector<1x144xi1> to vector<1x144xi1>
    %58 = vector.broadcast %57 : vector<1x144xi1> to vector<16x144xi1>
    %59 = vector.broadcast %cst_21 : f32 to vector<16x144xf32>
    %60 = arith.select %58, %1, %59 : vector<16x144xi1>, vector<16x144xf32>
    %cst_22 = arith.constant dense<0xFF800000> : vector<16xf32>
    %61 = vector.multi_reduction <maximumf>, %60, %cst_22 [1] : vector<16x144xf32> to vector<16xf32>
    %62 = vector.shape_cast %61 : vector<16xf32> to vector<1x16xf32>
    %63 = vector.extract_strided_slice %2 {offsets = [4, 0], sizes = [1, 144], strides = [1, 1]} : vector<14x144xf32> to vector<1x144xf32>
    %64 = vector.broadcast %63 : vector<1x144xf32> to vector<16x144xf32>
    %65 = arith.mulf %1, %64 : vector<16x144xf32>
    %cst_23 = arith.constant dense<0.000000e+00> : vector<16xf32>
    %66 = vector.multi_reduction <add>, %65, %cst_23 [1] : vector<16x144xf32> to vector<16xf32>
    %cst_24 = arith.constant 0.027777778 : f32
    %67 = vector.broadcast %cst_24 : f32 to vector<16xf32>
    %68 = arith.mulf %66, %67 : vector<16xf32>
    %69 = vector.shape_cast %68 : vector<16xf32> to vector<1x16xf32>
    %cst_25 = arith.constant 5.000000e-01 : f32
    %70 = vector.broadcast %cst_25 : f32 to vector<1x144xf32>
    %71 = arith.cmpf ogt, %63, %70 : vector<1x144xf32>
    %cst_26 = arith.constant -3.000000e+38 : f32
    %72 = vector.shape_cast %71 : vector<1x144xi1> to vector<1x144xi1>
    %73 = vector.broadcast %72 : vector<1x144xi1> to vector<16x144xi1>
    %74 = vector.broadcast %cst_26 : f32 to vector<16x144xf32>
    %75 = arith.select %73, %1, %74 : vector<16x144xi1>, vector<16x144xf32>
    %cst_27 = arith.constant dense<0xFF800000> : vector<16xf32>
    %76 = vector.multi_reduction <maximumf>, %75, %cst_27 [1] : vector<16x144xf32> to vector<16xf32>
    %77 = vector.shape_cast %76 : vector<16xf32> to vector<1x16xf32>
    %78 = vector.extract_strided_slice %2 {offsets = [5, 0], sizes = [1, 144], strides = [1, 1]} : vector<14x144xf32> to vector<1x144xf32>
    %79 = vector.broadcast %78 : vector<1x144xf32> to vector<16x144xf32>
    %80 = arith.mulf %1, %79 : vector<16x144xf32>
    %cst_28 = arith.constant dense<0.000000e+00> : vector<16xf32>
    %81 = vector.multi_reduction <add>, %80, %cst_28 [1] : vector<16x144xf32> to vector<16xf32>
    %cst_29 = arith.constant 6.250000e-02 : f32
    %82 = vector.broadcast %cst_29 : f32 to vector<16xf32>
    %83 = arith.mulf %81, %82 : vector<16xf32>
    %84 = vector.shape_cast %83 : vector<16xf32> to vector<1x16xf32>
    %cst_30 = arith.constant 5.000000e-01 : f32
    %85 = vector.broadcast %cst_30 : f32 to vector<1x144xf32>
    %86 = arith.cmpf ogt, %78, %85 : vector<1x144xf32>
    %cst_31 = arith.constant -3.000000e+38 : f32
    %87 = vector.shape_cast %86 : vector<1x144xi1> to vector<1x144xi1>
    %88 = vector.broadcast %87 : vector<1x144xi1> to vector<16x144xi1>
    %89 = vector.broadcast %cst_31 : f32 to vector<16x144xf32>
    %90 = arith.select %88, %1, %89 : vector<16x144xi1>, vector<16x144xf32>
    %cst_32 = arith.constant dense<0xFF800000> : vector<16xf32>
    %91 = vector.multi_reduction <maximumf>, %90, %cst_32 [1] : vector<16x144xf32> to vector<16xf32>
    %92 = vector.shape_cast %91 : vector<16xf32> to vector<1x16xf32>
    %93 = vector.extract_strided_slice %2 {offsets = [6, 0], sizes = [1, 144], strides = [1, 1]} : vector<14x144xf32> to vector<1x144xf32>
    %94 = vector.broadcast %93 : vector<1x144xf32> to vector<16x144xf32>
    %95 = arith.mulf %1, %94 : vector<16x144xf32>
    %cst_33 = arith.constant dense<0.000000e+00> : vector<16xf32>
    %96 = vector.multi_reduction <add>, %95, %cst_33 [1] : vector<16x144xf32> to vector<16xf32>
    %cst_34 = arith.constant 6.250000e-02 : f32
    %97 = vector.broadcast %cst_34 : f32 to vector<16xf32>
    %98 = arith.mulf %96, %97 : vector<16xf32>
    %99 = vector.shape_cast %98 : vector<16xf32> to vector<1x16xf32>
    %cst_35 = arith.constant 5.000000e-01 : f32
    %100 = vector.broadcast %cst_35 : f32 to vector<1x144xf32>
    %101 = arith.cmpf ogt, %93, %100 : vector<1x144xf32>
    %cst_36 = arith.constant -3.000000e+38 : f32
    %102 = vector.shape_cast %101 : vector<1x144xi1> to vector<1x144xi1>
    %103 = vector.broadcast %102 : vector<1x144xi1> to vector<16x144xi1>
    %104 = vector.broadcast %cst_36 : f32 to vector<16x144xf32>
    %105 = arith.select %103, %1, %104 : vector<16x144xi1>, vector<16x144xf32>
    %cst_37 = arith.constant dense<0xFF800000> : vector<16xf32>
    %106 = vector.multi_reduction <maximumf>, %105, %cst_37 [1] : vector<16x144xf32> to vector<16xf32>
    %107 = vector.shape_cast %106 : vector<16xf32> to vector<1x16xf32>
    %108 = vector.extract_strided_slice %2 {offsets = [7, 0], sizes = [1, 144], strides = [1, 1]} : vector<14x144xf32> to vector<1x144xf32>
    %109 = vector.broadcast %108 : vector<1x144xf32> to vector<16x144xf32>
    %110 = arith.mulf %1, %109 : vector<16x144xf32>
    %cst_38 = arith.constant dense<0.000000e+00> : vector<16xf32>
    %111 = vector.multi_reduction <add>, %110, %cst_38 [1] : vector<16x144xf32> to vector<16xf32>
    %cst_39 = arith.constant 6.250000e-02 : f32
    %112 = vector.broadcast %cst_39 : f32 to vector<16xf32>
    %113 = arith.mulf %111, %112 : vector<16xf32>
    %114 = vector.shape_cast %113 : vector<16xf32> to vector<1x16xf32>
    %cst_40 = arith.constant 5.000000e-01 : f32
    %115 = vector.broadcast %cst_40 : f32 to vector<1x144xf32>
    %116 = arith.cmpf ogt, %108, %115 : vector<1x144xf32>
    %cst_41 = arith.constant -3.000000e+38 : f32
    %117 = vector.shape_cast %116 : vector<1x144xi1> to vector<1x144xi1>
    %118 = vector.broadcast %117 : vector<1x144xi1> to vector<16x144xi1>
    %119 = vector.broadcast %cst_41 : f32 to vector<16x144xf32>
    %120 = arith.select %118, %1, %119 : vector<16x144xi1>, vector<16x144xf32>
    %cst_42 = arith.constant dense<0xFF800000> : vector<16xf32>
    %121 = vector.multi_reduction <maximumf>, %120, %cst_42 [1] : vector<16x144xf32> to vector<16xf32>
    %122 = vector.shape_cast %121 : vector<16xf32> to vector<1x16xf32>
    %123 = vector.extract_strided_slice %2 {offsets = [8, 0], sizes = [1, 144], strides = [1, 1]} : vector<14x144xf32> to vector<1x144xf32>
    %124 = vector.broadcast %123 : vector<1x144xf32> to vector<16x144xf32>
    %125 = arith.mulf %1, %124 : vector<16x144xf32>
    %cst_43 = arith.constant dense<0.000000e+00> : vector<16xf32>
    %126 = vector.multi_reduction <add>, %125, %cst_43 [1] : vector<16x144xf32> to vector<16xf32>
    %cst_44 = arith.constant 6.250000e-02 : f32
    %127 = vector.broadcast %cst_44 : f32 to vector<16xf32>
    %128 = arith.mulf %126, %127 : vector<16xf32>
    %129 = vector.shape_cast %128 : vector<16xf32> to vector<1x16xf32>
    %cst_45 = arith.constant 5.000000e-01 : f32
    %130 = vector.broadcast %cst_45 : f32 to vector<1x144xf32>
    %131 = arith.cmpf ogt, %123, %130 : vector<1x144xf32>
    %cst_46 = arith.constant -3.000000e+38 : f32
    %132 = vector.shape_cast %131 : vector<1x144xi1> to vector<1x144xi1>
    %133 = vector.broadcast %132 : vector<1x144xi1> to vector<16x144xi1>
    %134 = vector.broadcast %cst_46 : f32 to vector<16x144xf32>
    %135 = arith.select %133, %1, %134 : vector<16x144xi1>, vector<16x144xf32>
    %cst_47 = arith.constant dense<0xFF800000> : vector<16xf32>
    %136 = vector.multi_reduction <maximumf>, %135, %cst_47 [1] : vector<16x144xf32> to vector<16xf32>
    %137 = vector.shape_cast %136 : vector<16xf32> to vector<1x16xf32>
    %138 = vector.extract_strided_slice %2 {offsets = [9, 0], sizes = [1, 144], strides = [1, 1]} : vector<14x144xf32> to vector<1x144xf32>
    %139 = vector.broadcast %138 : vector<1x144xf32> to vector<16x144xf32>
    %140 = arith.mulf %1, %139 : vector<16x144xf32>
    %cst_48 = arith.constant dense<0.000000e+00> : vector<16xf32>
    %141 = vector.multi_reduction <add>, %140, %cst_48 [1] : vector<16x144xf32> to vector<16xf32>
    %cst_49 = arith.constant 6.250000e-02 : f32
    %142 = vector.broadcast %cst_49 : f32 to vector<16xf32>
    %143 = arith.mulf %141, %142 : vector<16xf32>
    %144 = vector.shape_cast %143 : vector<16xf32> to vector<1x16xf32>
    %cst_50 = arith.constant 5.000000e-01 : f32
    %145 = vector.broadcast %cst_50 : f32 to vector<1x144xf32>
    %146 = arith.cmpf ogt, %138, %145 : vector<1x144xf32>
    %cst_51 = arith.constant -3.000000e+38 : f32
    %147 = vector.shape_cast %146 : vector<1x144xi1> to vector<1x144xi1>
    %148 = vector.broadcast %147 : vector<1x144xi1> to vector<16x144xi1>
    %149 = vector.broadcast %cst_51 : f32 to vector<16x144xf32>
    %150 = arith.select %148, %1, %149 : vector<16x144xi1>, vector<16x144xf32>
    %cst_52 = arith.constant dense<0xFF800000> : vector<16xf32>
    %151 = vector.multi_reduction <maximumf>, %150, %cst_52 [1] : vector<16x144xf32> to vector<16xf32>
    %152 = vector.shape_cast %151 : vector<16xf32> to vector<1x16xf32>
    %153 = vector.extract_strided_slice %2 {offsets = [10, 0], sizes = [1, 144], strides = [1, 1]} : vector<14x144xf32> to vector<1x144xf32>
    %154 = vector.broadcast %153 : vector<1x144xf32> to vector<16x144xf32>
    %155 = arith.mulf %1, %154 : vector<16x144xf32>
    %cst_53 = arith.constant dense<0.000000e+00> : vector<16xf32>
    %156 = vector.multi_reduction <add>, %155, %cst_53 [1] : vector<16x144xf32> to vector<16xf32>
    %cst_54 = arith.constant 6.250000e-02 : f32
    %157 = vector.broadcast %cst_54 : f32 to vector<16xf32>
    %158 = arith.mulf %156, %157 : vector<16xf32>
    %159 = vector.shape_cast %158 : vector<16xf32> to vector<1x16xf32>
    %cst_55 = arith.constant 5.000000e-01 : f32
    %160 = vector.broadcast %cst_55 : f32 to vector<1x144xf32>
    %161 = arith.cmpf ogt, %153, %160 : vector<1x144xf32>
    %cst_56 = arith.constant -3.000000e+38 : f32
    %162 = vector.shape_cast %161 : vector<1x144xi1> to vector<1x144xi1>
    %163 = vector.broadcast %162 : vector<1x144xi1> to vector<16x144xi1>
    %164 = vector.broadcast %cst_56 : f32 to vector<16x144xf32>
    %165 = arith.select %163, %1, %164 : vector<16x144xi1>, vector<16x144xf32>
    %cst_57 = arith.constant dense<0xFF800000> : vector<16xf32>
    %166 = vector.multi_reduction <maximumf>, %165, %cst_57 [1] : vector<16x144xf32> to vector<16xf32>
    %167 = vector.shape_cast %166 : vector<16xf32> to vector<1x16xf32>
    %168 = vector.extract_strided_slice %2 {offsets = [11, 0], sizes = [1, 144], strides = [1, 1]} : vector<14x144xf32> to vector<1x144xf32>
    %169 = vector.broadcast %168 : vector<1x144xf32> to vector<16x144xf32>
    %170 = arith.mulf %1, %169 : vector<16x144xf32>
    %cst_58 = arith.constant dense<0.000000e+00> : vector<16xf32>
    %171 = vector.multi_reduction <add>, %170, %cst_58 [1] : vector<16x144xf32> to vector<16xf32>
    %cst_59 = arith.constant 6.250000e-02 : f32
    %172 = vector.broadcast %cst_59 : f32 to vector<16xf32>
    %173 = arith.mulf %171, %172 : vector<16xf32>
    %174 = vector.shape_cast %173 : vector<16xf32> to vector<1x16xf32>
    %cst_60 = arith.constant 5.000000e-01 : f32
    %175 = vector.broadcast %cst_60 : f32 to vector<1x144xf32>
    %176 = arith.cmpf ogt, %168, %175 : vector<1x144xf32>
    %cst_61 = arith.constant -3.000000e+38 : f32
    %177 = vector.shape_cast %176 : vector<1x144xi1> to vector<1x144xi1>
    %178 = vector.broadcast %177 : vector<1x144xi1> to vector<16x144xi1>
    %179 = vector.broadcast %cst_61 : f32 to vector<16x144xf32>
    %180 = arith.select %178, %1, %179 : vector<16x144xi1>, vector<16x144xf32>
    %cst_62 = arith.constant dense<0xFF800000> : vector<16xf32>
    %181 = vector.multi_reduction <maximumf>, %180, %cst_62 [1] : vector<16x144xf32> to vector<16xf32>
    %182 = vector.shape_cast %181 : vector<16xf32> to vector<1x16xf32>
    %183 = vector.extract_strided_slice %2 {offsets = [12, 0], sizes = [1, 144], strides = [1, 1]} : vector<14x144xf32> to vector<1x144xf32>
    %184 = vector.broadcast %183 : vector<1x144xf32> to vector<16x144xf32>
    %185 = arith.mulf %1, %184 : vector<16x144xf32>
    %cst_63 = arith.constant dense<0.000000e+00> : vector<16xf32>
    %186 = vector.multi_reduction <add>, %185, %cst_63 [1] : vector<16x144xf32> to vector<16xf32>
    %cst_64 = arith.constant 6.250000e-02 : f32
    %187 = vector.broadcast %cst_64 : f32 to vector<16xf32>
    %188 = arith.mulf %186, %187 : vector<16xf32>
    %189 = vector.shape_cast %188 : vector<16xf32> to vector<1x16xf32>
    %cst_65 = arith.constant 5.000000e-01 : f32
    %190 = vector.broadcast %cst_65 : f32 to vector<1x144xf32>
    %191 = arith.cmpf ogt, %183, %190 : vector<1x144xf32>
    %cst_66 = arith.constant -3.000000e+38 : f32
    %192 = vector.shape_cast %191 : vector<1x144xi1> to vector<1x144xi1>
    %193 = vector.broadcast %192 : vector<1x144xi1> to vector<16x144xi1>
    %194 = vector.broadcast %cst_66 : f32 to vector<16x144xf32>
    %195 = arith.select %193, %1, %194 : vector<16x144xi1>, vector<16x144xf32>
    %cst_67 = arith.constant dense<0xFF800000> : vector<16xf32>
    %196 = vector.multi_reduction <maximumf>, %195, %cst_67 [1] : vector<16x144xf32> to vector<16xf32>
    %197 = vector.shape_cast %196 : vector<16xf32> to vector<1x16xf32>
    %198 = vector.extract_strided_slice %2 {offsets = [13, 0], sizes = [1, 144], strides = [1, 1]} : vector<14x144xf32> to vector<1x144xf32>
    %199 = vector.broadcast %198 : vector<1x144xf32> to vector<16x144xf32>
    %200 = arith.mulf %1, %199 : vector<16x144xf32>
    %cst_68 = arith.constant dense<0.000000e+00> : vector<16xf32>
    %201 = vector.multi_reduction <add>, %200, %cst_68 [1] : vector<16x144xf32> to vector<16xf32>
    %cst_69 = arith.constant 6.250000e-02 : f32
    %202 = vector.broadcast %cst_69 : f32 to vector<16xf32>
    %203 = arith.mulf %201, %202 : vector<16xf32>
    %204 = vector.shape_cast %203 : vector<16xf32> to vector<1x16xf32>
    %cst_70 = arith.constant 5.000000e-01 : f32
    %205 = vector.broadcast %cst_70 : f32 to vector<1x144xf32>
    %206 = arith.cmpf ogt, %198, %205 : vector<1x144xf32>
    %cst_71 = arith.constant -3.000000e+38 : f32
    %207 = vector.shape_cast %206 : vector<1x144xi1> to vector<1x144xi1>
    %208 = vector.broadcast %207 : vector<1x144xi1> to vector<16x144xi1>
    %209 = vector.broadcast %cst_71 : f32 to vector<16x144xf32>
    %210 = arith.select %208, %1, %209 : vector<16x144xi1>, vector<16x144xf32>
    %cst_72 = arith.constant dense<0xFF800000> : vector<16xf32>
    %211 = vector.multi_reduction <maximumf>, %210, %cst_72 [1] : vector<16x144xf32> to vector<16xf32>
    %212 = vector.shape_cast %211 : vector<16xf32> to vector<1x16xf32>
    %213 = tpu.concatenate %9, %24, %39, %54, %69, %84, %99, %114, %129, %144, %159, %174, %189, %204, %17, %32 in 1 : vector<1x16xf32>, vector<1x16xf32>, vector<1x16xf32>, vector<1x16xf32>, vector<1x16xf32>, vector<1x16xf32>, vector<1x16xf32>, vector<1x16xf32>, vector<1x16xf32>, vector<1x16xf32>, vector<1x16xf32>, vector<1x16xf32>, vector<1x16xf32>, vector<1x16xf32>, vector<1x16xf32>, vector<1x16xf32> -> vector<1x256xf32>
    %214 = tpu.concatenate %47, %62, %77, %92, %107, %122, %137, %152, %167, %182, %197, %212 in 1 : vector<1x16xf32>, vector<1x16xf32>, vector<1x16xf32>, vector<1x16xf32>, vector<1x16xf32>, vector<1x16xf32>, vector<1x16xf32>, vector<1x16xf32>, vector<1x16xf32>, vector<1x16xf32>, vector<1x16xf32>, vector<1x16xf32> -> vector<1x192xf32>
    %215 = tpu.concatenate %213, %214 in 1 : vector<1x256xf32>, vector<1x192xf32> -> vector<1x448xf32>
    %c0_73 = arith.constant 0 : index
    %c0_74 = arith.constant 0 : index
    %216 = vector.load %arg3[%c0_73, %c0_74] : memref<448x28xf32, #tpu.memory_space<vmem>>, vector<448x28xf32>
    %cst_75 = arith.constant dense<0.000000e+00> : vector<1x28xf32>
    %217 = tpu.matmul %215, %216, %cst_75 {dimension_numbers = #tpu.dot_dimension_numbers<[1], [0], [0], [1], [0, 0, 1, 1], [], []>} : vector<1x448xf32>, vector<448x28xf32>, vector<1x28xf32> -> vector<1x28xf32>
    %cst_76 = arith.constant 0.000000e+00 : f32
    %218 = vector.broadcast %cst_76 : f32 to vector<1x28xf32>
    %219 = arith.maximumf %217, %218 : vector<1x28xf32>
    %c0_77 = arith.constant 0 : index
    %c0_78 = arith.constant 0 : index
    %220 = vector.load %arg4[%c0_77, %c0_78] : memref<28x16xf32, #tpu.memory_space<vmem>>, vector<28x16xf32>
    %cst_79 = arith.constant dense<0.000000e+00> : vector<1x16xf32>
    %221 = tpu.matmul %219, %220, %cst_79 {dimension_numbers = #tpu.dot_dimension_numbers<[1], [0], [0], [1], [0, 0, 1, 1], [], []>} : vector<1x28xf32>, vector<28x16xf32>, vector<1x16xf32> -> vector<1x16xf32>
    %c0_80 = arith.constant 0 : index
    %c0_81 = arith.constant 0 : index
    %222 = vector.load %arg5[%c0_80, %c0_81] : memref<1x16xf32, #tpu.memory_space<vmem>>, vector<1x16xf32>
    %223 = arith.addf %221, %222 : vector<1x16xf32>
    %224 = arith.negf %223 : vector<1x16xf32>
    %225 = math.exp %224 : vector<1x16xf32>
    %cst_82 = arith.constant 1.000000e+00 : f32
    %226 = vector.broadcast %cst_82 : f32 to vector<1x16xf32>
    %227 = arith.addf %226, %225 : vector<1x16xf32>
    %228 = arith.divf %226, %227 : vector<1x16xf32>
    %cst_83 = arith.constant dense<0xFF800000> : vector<144xf32>
    %229 = vector.multi_reduction <maximumf>, %1, %cst_83 [0] : vector<16x144xf32> to vector<144xf32>
    %230 = vector.shape_cast %229 : vector<144xf32> to vector<1x144xf32>
    %cst_84 = arith.constant dense<0.000000e+00> : vector<144xf32>
    %231 = vector.multi_reduction <add>, %1, %cst_84 [0] : vector<16x144xf32> to vector<144xf32>
    %232 = vector.shape_cast %231 : vector<144xf32> to vector<1x144xf32>
    %cst_85 = arith.constant 1.600000e+01 : f32
    %233 = vector.broadcast %cst_85 : f32 to vector<1x144xf32>
    %234 = arith.divf %232, %233 : vector<1x144xf32>
    %235 = tpu.concatenate %230, %234 in 1 : vector<1x144xf32>, vector<1x144xf32> -> vector<1x288xf32>
    %c0_86 = arith.constant 0 : index
    %c0_87 = arith.constant 0 : index
    %236 = vector.load %arg6[%c0_86, %c0_87] : memref<288x144xf32, #tpu.memory_space<vmem>>, vector<288x144xf32>
    %cst_88 = arith.constant dense<0.000000e+00> : vector<1x144xf32>
    %237 = tpu.matmul %235, %236, %cst_88 {dimension_numbers = #tpu.dot_dimension_numbers<[1], [0], [0], [1], [0, 0, 1, 1], [], []>} : vector<1x288xf32>, vector<288x144xf32>, vector<1x144xf32> -> vector<1x144xf32>
    %c0_89 = arith.constant 0 : index
    %238 = memref.load %arg8[%c0_89] : memref<1xf32, #tpu.memory_space<smem>>
    %239 = vector.broadcast %238 : f32 to vector<1x144xf32>
    %240 = arith.addf %237, %239 : vector<1x144xf32>
    %241 = arith.negf %240 : vector<1x144xf32>
    %242 = math.exp %241 : vector<1x144xf32>
    %cst_90 = arith.constant 1.000000e+00 : f32
    %243 = vector.broadcast %cst_90 : f32 to vector<1x144xf32>
    %244 = arith.addf %243, %242 : vector<1x144xf32>
    %245 = arith.divf %243, %244 : vector<1x144xf32>
    %c0_91 = arith.constant 0 : index
    %c0_92 = arith.constant 0 : index
    %246 = vector.load %arg7[%c0_91, %c0_92] : memref<16x16xf32, #tpu.memory_space<vmem>>, vector<16x16xf32>
    %247 = vector.broadcast %228 : vector<1x16xf32> to vector<16x16xf32>
    %248 = arith.mulf %246, %247 : vector<16x16xf32>
    %cst_93 = arith.constant dense<0.000000e+00> : vector<16x144xf32>
    %249 = tpu.matmul %248, %1, %cst_93 {dimension_numbers = #tpu.dot_dimension_numbers<[1], [0], [0], [1], [0, 0, 1, 1], [], []>} : vector<16x16xf32>, vector<16x144xf32>, vector<16x144xf32> -> vector<16x144xf32>
    %250 = vector.broadcast %245 : vector<1x144xf32> to vector<16x144xf32>
    %251 = arith.mulf %1, %250 : vector<16x144xf32>
    %252 = arith.addf %251, %249 : vector<16x144xf32>
    %cst_94 = arith.constant 5.000000e-01 : f32
    %253 = vector.broadcast %cst_94 : f32 to vector<16x144xf32>
    %254 = arith.mulf %253, %252 : vector<16x144xf32>
    %c0_95 = arith.constant 0 : index
    %c0_96 = arith.constant 0 : index
    %c0_97 = arith.constant 0 : index
    %255 = vector.load %arg10[%c0_95, %c0_96, %c0_97] : memref<1x16x144xf32, #tpu.memory_space<vmem>>, vector<1x16x144xf32>
    %256 = vector.shape_cast %255 : vector<1x16x144xf32> to vector<16x144xf32>
    %257 = vector.shape_cast %254 : vector<16x144xf32> to vector<1x16x144xf32>
    tpu.vector_store %arg10[%c0_95, %c0_96, %c0_97], %257 {strides = array<i32>} : memref<1x16x144xf32, #tpu.memory_space<vmem>>, vector<1x16x144xf32>,
    %258 = arith.subf %1, %254 : vector<16x144xf32>
    %c0_98 = arith.constant 0 : index
    %c0_99 = arith.constant 0 : index
    %c0_100 = arith.constant 0 : index
    %259 = vector.load %arg9[%c0_98, %c0_99, %c0_100] : memref<1x16x144xf32, #tpu.memory_space<vmem>>, vector<1x16x144xf32>
    %260 = vector.shape_cast %259 : vector<1x16x144xf32> to vector<16x144xf32>
    %261 = vector.shape_cast %258 : vector<16x144xf32> to vector<1x16x144xf32>
    tpu.vector_store %arg9[%c0_98, %c0_99, %c0_100], %261 {strides = array<i32>} : memref<1x16x144xf32, #tpu.memory_space<vmem>>, vector<1x16x144xf32>,
    return
  }
  func.func @transform_0(%arg0: i32) -> (i32, i32, i32) {
    %c0_i32 = arith.constant 0 : i32
    %c0_i32_0 = arith.constant 0 : i32
    %c0_i32_1 = arith.constant 0 : i32
    return %arg0, %c0_i32, %c0_i32_0 : i32, i32, i32
  }
  func.func @transform_1(%arg0: i32) -> (i32, i32) {
    %c0_i32 = arith.constant 0 : i32
    %c0_i32_0 = arith.constant 0 : i32
    %c0_i32_1 = arith.constant 0 : i32
    return %c0_i32, %c0_i32_0 : i32, i32
  }
  func.func @transform_2(%arg0: i32) -> (i32, i32) {
    %c0_i32 = arith.constant 0 : i32
    %c0_i32_0 = arith.constant 0 : i32
    %c0_i32_1 = arith.constant 0 : i32
    return %c0_i32, %c0_i32_0 : i32, i32
  }
  func.func @transform_3(%arg0: i32) -> (i32, i32) {
    %c0_i32 = arith.constant 0 : i32
    %c0_i32_0 = arith.constant 0 : i32
    %c0_i32_1 = arith.constant 0 : i32
    return %c0_i32, %c0_i32_0 : i32, i32
  }
  func.func @transform_4(%arg0: i32) -> (i32, i32) {
    %c0_i32 = arith.constant 0 : i32
    %c0_i32_0 = arith.constant 0 : i32
    %c0_i32_1 = arith.constant 0 : i32
    return %c0_i32, %c0_i32_0 : i32, i32
  }
  func.func @transform_5(%arg0: i32) -> (i32, i32) {
    %c0_i32 = arith.constant 0 : i32
    %c0_i32_0 = arith.constant 0 : i32
    %c0_i32_1 = arith.constant 0 : i32
    return %c0_i32, %c0_i32_0 : i32, i32
  }
  func.func @transform_6(%arg0: i32) -> (i32, i32) {
    %c0_i32 = arith.constant 0 : i32
    %c0_i32_0 = arith.constant 0 : i32
    %c0_i32_1 = arith.constant 0 : i32
    return %c0_i32, %c0_i32_0 : i32, i32
  }
  func.func @transform_7(%arg0: i32) -> i32 {
    %c0_i32 = arith.constant 0 : i32
    %c0_i32_0 = arith.constant 0 : i32
    return %c0_i32 : i32
  }
  func.func @transform_8(%arg0: i32) -> (i32, i32, i32) {
    %c0_i32 = arith.constant 0 : i32
    %c0_i32_0 = arith.constant 0 : i32
    %c0_i32_1 = arith.constant 0 : i32
    return %arg0, %c0_i32, %c0_i32_0 : i32, i32, i32
  }
  func.func @transform_9(%arg0: i32) -> (i32, i32, i32) {
    %c0_i32 = arith.constant 0 : i32
    %c0_i32_0 = arith.constant 0 : i32
    %c0_i32_1 = arith.constant 0 : i32
    return %arg0, %c0_i32, %c0_i32_0 : i32, i32, i32
  }
}

</mosaic_0001>

<llo_original>
// kernel: attention_forward.1
$region0: #{attention_forward.1}
  #allocation0 [shape = 'u32[]', space=smem, size = 0x4, offset = 0x4, fixed_abs, tag = 'smem constant byte address 0x4 - core index']
  #allocation1 [shape = 'u32[144,128]{1,0:T(1,128)}', space=vmem, size = 0x12000, scoped, tag = 'internal scratch']
  #allocation2 [shape = 'f32[1]{0:T(128)S(6)}', space=smem, size = 0x200, scoped, tag = 'scoped memory for attention_forward.1']
  %s0 = inlined_call_operand.vmem [shape: f32[2,16,144], index: 0, kind: input, shape index: {}]
  %s1 = inlined_call_operand.vmem [shape: f32[14,144], index: 1, kind: input, shape index: {}]
  %s2 = inlined_call_operand.vmem [shape: f32[448,28], index: 2, kind: input, shape index: {}]
  %s3 = inlined_call_operand.vmem [shape: f32[28,16], index: 3, kind: input, shape index: {}]
  %s4 = inlined_call_operand.vmem [shape: f32[1,16], index: 4, kind: input, shape index: {}]
  %s5 = inlined_call_operand.vmem [shape: f32[288,144], index: 5, kind: input, shape index: {}]
  %s6 = inlined_call_operand.vmem [shape: f32[16,16], index: 6, kind: input, shape index: {}]
  %s7 = inlined_call_operand.<no memory space> [shape: f32[1], index: 7, kind: input, shape index: {}]
  %s8 = inlined_call_operand.vmem [shape: f32[2,16,144], index: 8, kind: output, shape index: {0}]
  %s9 = inlined_call_operand.vmem [shape: f32[2,16,144], index: 9, kind: output, shape index: {1}]
  %10 = xla_tuple %s8, %s9
  %s11 = sld [smem:[#allocation0]]
  $region73: #{attention_forward.1} parent=0
    _
  %s13 = ssub.s32 1, %s11
  %s14 = scalar_select 0, %s13, %s11
  %15 = sst [smem:[#allocation2]] %s7
  loop: start=0, step=1, limit=4
  $region2: #{attention_forward.1} parent=0 // loop_pre_header
    _
  $region3: #{attention_forward.1} parent=0 // loop_header
    %s17 = sphi 0, %s21
    %p18 = scmp.ge.s32.totalorder %s17, 4
    %s27 = sphi 0, %s29
    %s30 = sphi 0, %s27
    %s31 = sphi 0, %s30
    %s47 = sphi 0, %s31
    %s51 = sphi 0, %s51
    %s53 = sphi 0, %s51
    %s54 = sphi 0, %s53
    %s68 = sphi 0, %s54
    %s72 = sphi 0, %s72
    %s74 = sphi 0, %s72
    %s75 = sphi 0, %s74
    %s89 = sphi 0, %s75
    %s93 = sphi 0, %s93
    %s95 = sphi 0, %s93
    %s96 = sphi 0, %s95
    %s110 = sphi 0, %s96
    %s114 = sphi 0, %s114
    %s116 = sphi 0, %s114
    %s117 = sphi 0, %s116
    %s131 = sphi 0, %s117
    %s135 = sphi 0, %s135
    %s137 = sphi 0, %s135
    %s138 = sphi 0, %s137
    %s152 = sphi 0, %s138
    %s156 = sphi 0, %s156
    %s158 = sphi 0, %s156
    %s159 = sphi 0, %s158
    %s173 = sphi 0, %s159
    %s177 = sphi 0, %s177
    %s179 = sphi 0, %s177
    %s180 = sphi 0, %s179
    %s194 = sphi 0, %s180
    %s200 = sphi 0, %s202
    %s203 = sphi 0, %s200
    %s204 = sphi 0, %s203
    %s220 = sphi 0, %s204
    %s226 = sphi 0, %s228
    %s229 = sphi 0, %s226
    %s230 = sphi 0, %s229
    %s246 = sphi 0, %s230
  $region4: #{attention_forward.1} parent=0 // loop_header_branch
    %20 = sbr.rel (%p18) target = $region8
  $region5: #{attention_forward.1} parent=0 // loop_body
    %s22 = ssub.s32 %s17, 1
    %s23 = ssub.s32 %s17, 2
    %s24 = sadd.s32 %s17, 1
    %s25 = ssub.s32 %s17, %s24
    %p26 = scmp.eq.s32.totalorder %s25, 0
    %s28 = sadd.s32 %s27, 1
    %s29 = scalar_select %p26, %s27, %s28
    %p32 = pneg %p26
    %p33 = scmp.eq.s32.totalorder %s17, 1
    %p34 = por %p32, %p33
    %p35 = scmp.ne.s32.totalorder %s27, %s30
    %p36 = scmp.eq.s32.totalorder %s17, 0
    %p37 = por %p35, %p36
    %p38 = scmp.ne.s32.totalorder %s27, %s30
    %p39 = scmp.eq.s32.totalorder %s22, 1
    %p40 = por %p38, %p39
    %p41 = scmp.ne.s32.totalorder %s30, %s31
    %p42 = scmp.eq.s32.totalorder %s22, 0
    %p43 = por %p41, %p42
    %p44 = scmp.ne.s32.totalorder %s30, %s31
    %p45 = scmp.eq.s32.totalorder %s23, 1
    %p46 = por %p44, %p45
    %p48 = scmp.ne.s32.totalorder %s31, %s47
    %p49 = scmp.eq.s32.totalorder %s23, 0
    %p50 = por %p48, %p49
    %s52 = sadd.s32 %s51, 1
    %p55 = scmp.eq.s32.totalorder %s17, 1
    %p56 = scmp.ne.s32.totalorder %s51, %s53
    %p57 = scmp.eq.s32.totalorder %s17, 0
    %p58 = por %p56, %p57
    %p59 = scmp.ne.s32.totalorder %s51, %s53
    %p60 = scmp.eq.s32.totalorder %s22, 1
    %p61 = por %p59, %p60
    %p62 = scmp.ne.s32.totalorder %s53, %s54
    %p63 = scmp.eq.s32.totalorder %s22, 0
    %p64 = por %p62, %p63
    %p65 = scmp.ne.s32.totalorder %s53, %s54
    %p66 = scmp.eq.s32.totalorder %s23, 1
    %p67 = por %p65, %p66
    %p69 = scmp.ne.s32.totalorder %s54, %s68
    %p70 = scmp.eq.s32.totalorder %s23, 0
    %p71 = por %p69, %p70
    %s73 = sadd.s32 %s72, 1
    %p76 = scmp.eq.s32.totalorder %s17, 1
    %p77 = scmp.ne.s32.totalorder %s72, %s74
    %p78 = scmp.eq.s32.totalorder %s17, 0
    %p79 = por %p77, %p78
    %p80 = scmp.ne.s32.totalorder %s72, %s74
    %p81 = scmp.eq.s32.totalorder %s22, 1
    %p82 = por %p80, %p81
    %p83 = scmp.ne.s32.totalorder %s74, %s75
    %p84 = scmp.eq.s32.totalorder %s22, 0
    %p85 = por %p83, %p84
    %p86 = scmp.ne.s32.totalorder %s74, %s75
    %p87 = scmp.eq.s32.totalorder %s23, 1
    %p88 = por %p86, %p87
    %p90 = scmp.ne.s32.totalorder %s75, %s89
    %p91 = scmp.eq.s32.totalorder %s23, 0
    %p92 = por %p90, %p91
    %s94 = sadd.s32 %s93, 1
    %p97 = scmp.eq.s32.totalorder %s17, 1
    %p98 = scmp.ne.s32.totalorder %s93, %s95
    %p99 = scmp.eq.s32.totalorder %s17, 0
    %p100 = por %p98, %p99
    %p101 = scmp.ne.s32.totalorder %s93, %s95
    %p102 = scmp.eq.s32.totalorder %s22, 1
    %p103 = por %p101, %p102
    %p104 = scmp.ne.s32.totalorder %s95, %s96
    %p105 = scmp.eq.s32.totalorder %s22, 0
    %p106 = por %p104, %p105
    %p107 = scmp.ne.s32.totalorder %s95, %s96
    %p108 = scmp.eq.s32.totalorder %s23, 1
    %p109 = por %p107, %p108
    %p111 = scmp.ne.s32.totalorder %s96, %s110
    %p112 = scmp.eq.s32.totalorder %s23, 0
    %p113 = por %p111, %p112
    %s115 = sadd.s32 %s114, 1
    %p118 = scmp.eq.s32.totalorder %s17, 1
    %p119 = scmp.ne.s32.totalorder %s114, %s116
    %p120 = scmp.eq.s32.totalorder %s17, 0
    %p121 = por %p119, %p120
    %p122 = scmp.ne.s32.totalorder %s114, %s116
    %p123 = scmp.eq.s32.totalorder %s22, 1
    %p124 = por %p122, %p123
    %p125 = scmp.ne.s32.totalorder %s116, %s117
    %p126 = scmp.eq.s32.totalorder %s22, 0
    %p127 = por %p125, %p126
    %p128 = scmp.ne.s32.totalorder %s116, %s117
    %p129 = scmp.eq.s32.totalorder %s23, 1
    %p130 = por %p128, %p129
    %p132 = scmp.ne.s32.totalorder %s117, %s131
    %p133 = scmp.eq.s32.totalorder %s23, 0
    %p134 = por %p132, %p133
    %s136 = sadd.s32 %s135, 1
    %p139 = scmp.eq.s32.totalorder %s17, 1
    %p140 = scmp.ne.s32.totalorder %s135, %s137
    %p141 = scmp.eq.s32.totalorder %s17, 0
    %p142 = por %p140, %p141
    %p143 = scmp.ne.s32.totalorder %s135, %s137
    %p144 = scmp.eq.s32.totalorder %s22, 1
    %p145 = por %p143, %p144
    %p146 = scmp.ne.s32.totalorder %s137, %s138
    %p147 = scmp.eq.s32.totalorder %s22, 0
    %p148 = por %p146, %p147
    %p149 = scmp.ne.s32.totalorder %s137, %s138
    %p150 = scmp.eq.s32.totalorder %s23, 1
    %p151 = por %p149, %p150
    %p153 = scmp.ne.s32.totalorder %s138, %s152
    %p154 = scmp.eq.s32.totalorder %s23, 0
    %p155 = por %p153, %p154
    %s157 = sadd.s32 %s156, 1
    %p160 = scmp.eq.s32.totalorder %s17, 1
    %p161 = scmp.ne.s32.totalorder %s156, %s158
    %p162 = scmp.eq.s32.totalorder %s17, 0
    %p163 = por %p161, %p162
    %p164 = scmp.ne.s32.totalorder %s156, %s158
    %p165 = scmp.eq.s32.totalorder %s22, 1
    %p166 = por %p164, %p165
    %p167 = scmp.ne.s32.totalorder %s158, %s159
    %p168 = scmp.eq.s32.totalorder %s22, 0
    %p169 = por %p167, %p168
    %p170 = scmp.ne.s32.totalorder %s158, %s159
    %p171 = scmp.eq.s32.totalorder %s23, 1
    %p172 = por %p170, %p171
    %p174 = scmp.ne.s32.totalorder %s159, %s173
    %p175 = scmp.eq.s32.totalorder %s23, 0
    %p176 = por %p174, %p175
    %s178 = sadd.s32 %s177, 1
    %p181 = scmp.eq.s32.totalorder %s17, 1
    %p182 = scmp.ne.s32.totalorder %s177, %s179
    %p183 = scmp.eq.s32.totalorder %s17, 0
    %p184 = por %p182, %p183
    %p185 = scmp.ne.s32.totalorder %s177, %s179
    %p186 = scmp.eq.s32.totalorder %s22, 1
    %p187 = por %p185, %p186
    %p188 = scmp.ne.s32.totalorder %s179, %s180
    %p189 = scmp.eq.s32.totalorder %s22, 0
    %p190 = por %p188, %p189
    %p191 = scmp.ne.s32.totalorder %s179, %s180
    %p192 = scmp.eq.s32.totalorder %s23, 1
    %p193 = por %p191, %p192
    %p195 = scmp.ne.s32.totalorder %s180, %s194
    %p196 = scmp.eq.s32.totalorder %s23, 0
    %p197 = por %p195, %p196
    %s198 = ssub.s32 %s17, %s24
    %p199 = scmp.eq.s32.totalorder %s198, 0
    %s201 = sadd.s32 %s200, 1
    %s202 = scalar_select %p199, %s200, %s201
    %p205 = pneg %p199
    %p206 = scmp.eq.s32.totalorder %s17, 1
    %p207 = por %p205, %p206
    %p208 = scmp.ne.s32.totalorder %s200, %s203
    %p209 = scmp.eq.s32.totalorder %s17, 0
    %p210 = por %p208, %p209
    %p211 = scmp.ne.s32.totalorder %s200, %s203
    %p212 = scmp.eq.s32.totalorder %s22, 1
    %p213 = por %p211, %p212
    %p214 = scmp.ne.s32.totalorder %s203, %s204
    %p215 = scmp.eq.s32.totalorder %s22, 0
    %p216 = por %p214, %p215
    %p217 = scmp.ne.s32.totalorder %s203, %s204
    %p218 = scmp.eq.s32.totalorder %s23, 1
    %p219 = por %p217, %p218
    %p221 = scmp.ne.s32.totalorder %s204, %s220
    %p222 = scmp.eq.s32.totalorder %s23, 0
    %p223 = por %p221, %p222
    %s224 = ssub.s32 %s17, %s24
    %p225 = scmp.eq.s32.totalorder %s224, 0
    %s227 = sadd.s32 %s226, 1
    %s228 = scalar_select %p225, %s226, %s227
    %p231 = pneg %p225
    %p232 = scmp.eq.s32.totalorder %s17, 1
    %p233 = por %p231, %p232
    %p234 = scmp.ne.s32.totalorder %s226, %s229
    %p235 = scmp.eq.s32.totalorder %s17, 0
    %p236 = por %p234, %p235
    %p237 = scmp.ne.s32.totalorder %s226, %s229
    %p238 = scmp.eq.s32.totalorder %s22, 1
    %p239 = por %p237, %p238
    %p240 = scmp.ne.s32.totalorder %s229, %s230
    %p241 = scmp.eq.s32.totalorder %s22, 0
    %p242 = por %p240, %p241
    %p243 = scmp.ne.s32.totalorder %s229, %s230
    %p244 = scmp.eq.s32.totalorder %s23, 1
    %p245 = por %p243, %p244
    %p247 = scmp.ne.s32.totalorder %s230, %s246
    %p248 = scmp.eq.s32.totalorder %s23, 0
    %p249 = por %p247, %p248
    %p250 = scmp.le.s32.totalorder 1, %s17
    %p251 = scmp.lt.s32.totalorder %s17, 3
    %p252 = pnand %p250, %p251
    %p253 = pneg %p252
    // Predicated region
    $region9: #{attention_forward.1} parent=5 // pred_check
      _
    $region10: #{attention_forward.1} parent=5 // pred_check_branch
      %255 = sbr.rel (%p252) target = $region12
    $region11: #{attention_forward.1} parent=5 // pred_region
      %s256 = ssub.s32 %s17, 1
      // Predicated region
      $region13: #{attention_forward.1} parent=11 // pred_check
        %p257 = pneg %p64
      $region14: #{attention_forward.1} parent=11 // pred_check_branch
        %259 = sbr.rel (%p257) target = $region16
      $region15: #{attention_forward.1} parent=11 // pred_region
        _
      $region16: #{attention_forward.1} parent=11 // pred_fallthru
        _
      // Predicated region
      $region17: #{attention_forward.1} parent=11 // pred_check
        %p260 = pneg %p85
      $region18: #{attention_forward.1} parent=11 // pred_check_branch
        %262 = sbr.rel (%p260) target = $region20
      $region19: #{attention_forward.1} parent=11 // pred_region
        _
      $region20: #{attention_forward.1} parent=11 // pred_fallthru
        _
      // Predicated region
      $region21: #{attention_forward.1} parent=11 // pred_check
        %p263 = pneg %p106
      $region22: #{attention_forward.1} parent=11 // pred_check_branch
        %265 = sbr.rel (%p263) target = $region24
      $region23: #{attention_forward.1} parent=11 // pred_region
        _
      $region24: #{attention_forward.1} parent=11 // pred_fallthru
        _
      // Predicated region
      $region25: #{attention_forward.1} parent=11 // pred_check
        %p266 = pneg %p127
      $region26: #{attention_forward.1} parent=11 // pred_check_branch
        %268 = sbr.rel (%p266) target = $region28
      $region27: #{attention_forward.1} parent=11 // pred_region
        _
      $region28: #{attention_forward.1} parent=11 // pred_fallthru
        _
      // Predicated region
      $region29: #{attention_forward.1} parent=11 // pred_check
        %p269 = pneg %p148
      $region30: #{attention_forward.1} parent=11 // pred_check_branch
        %271 = sbr.rel (%p269) target = $region32
      $region31: #{attention_forward.1} parent=11 // pred_region
        _
      $region32: #{attention_forward.1} parent=11 // pred_fallthru
        _
      // Predicated region
      $region33: #{attention_forward.1} parent=11 // pred_check
        %p272 = pneg %p169
      $region34: #{attention_forward.1} parent=11 // pred_check_branch
        %274 = sbr.rel (%p272) target = $region36
      $region35: #{attention_forward.1} parent=11 // pred_region
        _
      $region36: #{attention_forward.1} parent=11 // pred_fallthru
        _
      // Predicated region
      $region37: #{attention_forward.1} parent=11 // pred_check
        %p275 = pneg %p190
      $region38: #{attention_forward.1} parent=11 // pred_check_branch
        %277 = sbr.rel (%p275) target = $region40
      $region39: #{attention_forward.1} parent=11 // pred_region
        _
      $region40: #{attention_forward.1} parent=11 // pred_fallthru
        _
    $region12: #{attention_forward.1} parent=5 // pred_fallthru
      _
    %p278 = scmp.lt.s32.totalorder %s17, 2
    // Predicated region
    $region41: #{attention_forward.1} parent=5 // pred_check
      %p279 = pneg %p278
    $region42: #{attention_forward.1} parent=5 // pred_check_branch
      %281 = sbr.rel (%p279) target = $region44
    $region43: #{attention_forward.1} parent=5 // pred_region
      // Predicated region
      $region45: #{attention_forward.1} parent=43 // pred_check
        %p282 = pneg %p37
      $region46: #{attention_forward.1} parent=43 // pred_check_branch
        %284 = sbr.rel (%p282) target = $region48
      $region47: #{attention_forward.1} parent=43 // pred_region
        %p285 = scmp.lt.s32.totalorder %s17, 1
        %s286 = scalar_select %p285, %s17, 1
        %s287 = smul.addr %s286, 4
        %s288 = smul.addr %s287, 8
        %s289 = scalar_lea.vmem %s0, %s288
      $region48: #{attention_forward.1} parent=43 // pred_fallthru
        _
    $region44: #{attention_forward.1} parent=5 // pred_fallthru
      _
    %p290 = scmp.le.s32.totalorder 1, %s17
    %p291 = scmp.lt.s32.totalorder %s17, 3
    %p292 = pnand %p290, %p291
    %p293 = pneg %p292
    // Predicated region
    $region49: #{attention_forward.1} parent=5 // pred_check
      _
    $region50: #{attention_forward.1} parent=5 // pred_check_branch
      %295 = sbr.rel (%p292) target = $region52
    $region51: #{attention_forward.1} parent=5 // pred_region
      %s296 = ssub.s32 %s17, 1
      %p297 = scmp.lt.s32.totalorder %s22, 1
      %s298 = scalar_select %p297, %s22, 1
      %s299 = smul.addr %s298, 4
      %s300 = smul.addr %s299, 8
      %s301 = scalar_lea.vmem %s0, %s300
      %p302 = pneg %p43
      %p303 = pneg %p40
      %p304 = pneg %p64
      %p305 = pneg %p61
      %p306 = pneg %p85
      %p307 = pneg %p82
      %p308 = pneg %p106
      %p309 = pneg %p103
      %p310 = pneg %p127
      %p311 = pneg %p124
      %p312 = pneg %p148
      %p313 = pneg %p145
      %p314 = pneg %p169
      %p315 = pneg %p166
      %p316 = pneg %p190
      %p317 = pneg %p187
      %p318 = pneg %p216
      %p319 = pneg %p213
      %p320 = scmp.lt.s32.totalorder %s22, 1
      %s321 = scalar_select %p320, %s22, 1
      %s322 = smul.addr %s321, 4
      %s323 = smul.addr %s322, 8
      %s324 = scalar_lea.vmem %s8, %s323
      %p325 = pneg %p242
      %p326 = pneg %p239
      %p327 = scmp.lt.s32.totalorder %s22, 1
      %s328 = scalar_select %p327, %s22, 1
      %s329 = smul.addr %s328, 4
      %s330 = smul.addr %s329, 8
      %s331 = scalar_lea.vmem %s9, %s330
      %p332 = scmp.lt.s32.totalorder %s22, 1
      %s333 = scalar_select %p332, %s22, 1
      %s334 = smul.addr %s333, 4
      %s335 = smul.addr %s334, 8
      %s336 = scalar_lea.vmem %s0, %s335
      %p337 = scmp.lt.s32.totalorder %s22, 1
      %s338 = scalar_select %p337, %s22, 1
      %s339 = smul.addr %s338, 4
      %s340 = smul.addr %s339, 8
      %s341 = scalar_lea.vmem %s8, %s340
      %p342 = scmp.lt.s32.totalorder %s22, 1
      %s343 = scalar_select %p342, %s22, 1
      %s344 = smul.addr %s343, 4
      %s345 = smul.addr %s344, 8
      %s346 = scalar_lea.vmem %s9, %s345
      %v347 = vld [vmem:[%s336] sm:$0xff]
      %v348 = vld [vmem:[%s336 + $0x8] sm:$0xff]
      %v349 = vld [vmem:[%s336 + $0x10] sm:$0xff]
      %v350 = vld [vmem:[%s336 + $0x18] sm:$0xff]
      %v351 = vld [vmem:[%s1] sm:$0xff]
      %v352 = vld [vmem:[%s1 + $0x8] sm:$0xff]
      %v353 = vld [vmem:[%s1 + $0x10] sm:$0x3f]
      %v354 = vld [vmem:[%s1 + $0x18] sm:$0x3f]
      %v355 = vlaneseq
      %v356 = vshrl.u32 %v355, 7
      %v357 = vsub.s32 0, %v356
      %v358 = vrot.slane %v351, %v357
      %v359 = vlaneseq
      %v360 = vshrl.u32 %v359, 7
      %v361 = vsub.s32 0, %v360
      %v362 = vrot.slane %v352, %v361
      %v363 = vmul.f32 %v347, %v358
      %v364 = vmul.f32 %v348, %v362
      %v365 = vmul.f32 %v349, %v358
      %v366 = vmul.f32 %v350, %v362
      %vm367 = vcmask 130048
      %v368 = vsel %vm367, %v364, 0.0
      %v369 = vadd.f32 %v363, %v368
      %370 = vadd.xlane.f32.xlu0 %v369
      %v371 = vpop.xlane.xlu0 %370
      %v372 = vsel %vm367, %v366, 0.0
      %v373 = vadd.f32 %v365, %v372
      %374 = vadd.xlane.f32.xlu0 %v373
      %v375 = vpop.xlane.xlu0 %374
      %v376 = vmul.f32 %v371, 0.0069444445
      %v377 = vmul.f32 %v375, 0.0069444445
      %vm378 = vcmp.gt.f32.partialorder %v351, 0.5
      %vm379 = vcmp.gt.f32.partialorder %v352, 0.5
      %v380 = vsel %vm378, 1, 0
      %v381 = vsel %vm379, 1, 0
      %v382 = vlaneseq
      %v383 = vshrl.u32 %v382, 7
      %v384 = vsub.s32 0, %v383
      %v385 = vrot.slane %v380, %v384
      %v386 = vlaneseq
      %v387 = vshrl.u32 %v386, 7
      %v388 = vsub.s32 0, %v387
      %v389 = vrot.slane %v381, %v388
      %vm390 = vcmp.eq.s32.totalorder %v385, 1
      %vm391 = vcmp.eq.s32.totalorder %v389, 1
      %v392 = vsel %vm390, %v347, -3e+38
      %v393 = vsel %vm391, %v348, -3e+38
      %v394 = vsel %vm390, %v349, -3e+38
      %v395 = vsel %vm391, %v350, -3e+38
      %v396 = vsel %vm367, %v393, -inf
      %v397 = vmax.f32 %v392, %v396
      %398 = vmax.xlane.f32.xlu0 %v397
      %v399 = vpop.xlane.xlu0 %398
      %v400 = vsel %vm367, %v395, -inf
      %v401 = vmax.f32 %v394, %v400
      %402 = vmax.xlane.f32.xlu0 %v401
      %v403 = vpop.xlane.xlu0 %402
      %v404 = vlaneseq
      %v405 = vshrl.u32 %v404, 7
      %v406 = vsub.s32 1, %v405
      %v407 = vrot.slane %v351, %v406
      %v408 = vlaneseq
      %v409 = vshrl.u32 %v408, 7
      %v410 = vsub.s32 1, %v409
      %v411 = vrot.slane %v352, %v410
      %v412 = vmul.f32 %v347, %v407
      %v413 = vmul.f32 %v348, %v411
      %v414 = vmul.f32 %v349, %v407
      %v415 = vmul.f32 %v350, %v411
      %v416 = vsel %vm367, %v413, 0.0
      %v417 = vadd.f32 %v412, %v416
      %418 = vadd.xlane.f32.xlu0 %v417
      %v419 = vpop.xlane.xlu0 %418
      %v420 = vsel %vm367, %v415, 0.0
      %v421 = vadd.f32 %v414, %v420
      %422 = vadd.xlane.f32.xlu0 %v421
      %v423 = vpop.xlane.xlu0 %422
      %v424 = vmul.f32 %v419, 0.027777778
      %v425 = vmul.f32 %v423, 0.027777778
      %v426 = vlaneseq
      %v427 = vshrl.u32 %v426, 7
      %v428 = vsub.s32 1, %v427
      %v429 = vrot.slane %v380, %v428
      %v430 = vlaneseq
      %v431 = vshrl.u32 %v430, 7
      %v432 = vsub.s32 1, %v431
      %v433 = vrot.slane %v381, %v432
      %vm434 = vcmp.eq.s32.totalorder %v429, 1
      %vm435 = vcmp.eq.s32.totalorder %v433, 1
      %v436 = vsel %vm434, %v347, -3e+38
      %v437 = vsel %vm435, %v348, -3e+38
      %v438 = vsel %vm434, %v349, -3e+38
      %v439 = vsel %vm435, %v350, -3e+38
      %v440 = vsel %vm367, %v437, -inf
      %v441 = vmax.f32 %v436, %v440
      %442 = vmax.xlane.f32.xlu0 %v441
      %v443 = vpop.xlane.xlu0 %442
      %v444 = vsel %vm367, %v439, -inf
      %v445 = vmax.f32 %v438, %v444
      %446 = vmax.xlane.f32.xlu0 %v445
      %v447 = vpop.xlane.xlu0 %446
      %v448 = vlaneseq
      %v449 = vshrl.u32 %v448, 7
      %v450 = vsub.s32 2, %v449
      %v451 = vrot.slane %v351, %v450
      %v452 = vlaneseq
      %v453 = vshrl.u32 %v452, 7
      %v454 = vsub.s32 2, %v453
      %v455 = vrot.slane %v352, %v454
      %v456 = vmul.f32 %v347, %v451
      %v457 = vmul.f32 %v348, %v455
      %v458 = vmul.f32 %v349, %v451
      %v459 = vmul.f32 %v350, %v455
      %v460 = vsel %vm367, %v457, 0.0
      %v461 = vadd.f32 %v456, %v460
      %462 = vadd.xlane.f32.xlu0 %v461
      %v463 = vpop.xlane.xlu0 %462
      %v464 = vsel %vm367, %v459, 0.0
      %v465 = vadd.f32 %v458, %v464
      %466 = vadd.xlane.f32.xlu0 %v465
      %v467 = vpop.xlane.xlu0 %466
      %v468 = vmul.f32 %v463, 0.027777778
      %v469 = vmul.f32 %v467, 0.027777778
      %v470 = vlaneseq
      %v471 = vshrl.u32 %v470, 7
      %v472 = vsub.s32 2, %v471
      %v473 = vrot.slane %v380, %v472
      %v474 = vlaneseq
      %v475 = vshrl.u32 %v474, 7
      %v476 = vsub.s32 2, %v475
      %v477 = vrot.slane %v381, %v476
      %vm478 = vcmp.eq.s32.totalorder %v473, 1
      %vm479 = vcmp.eq.s32.totalorder %v477, 1
      %v480 = vsel %vm478, %v347, -3e+38
      %v481 = vsel %vm479, %v348, -3e+38
      %v482 = vsel %vm478, %v349, -3e+38
      %v483 = vsel %vm479, %v350, -3e+38
      %v484 = vsel %vm367, %v481, -inf
      %v485 = vmax.f32 %v480, %v484
      %486 = vmax.xlane.f32.xlu0 %v485
      %v487 = vpop.xlane.xlu0 %486
      %v488 = vsel %vm367, %v483, -inf
      %v489 = vmax.f32 %v482, %v488
      %490 = vmax.xlane.f32.xlu0 %v489
      %v491 = vpop.xlane.xlu0 %490
      %v492 = vlaneseq
      %v493 = vshrl.u32 %v492, 7
      %v494 = vsub.s32 3, %v493
      %v495 = vrot.slane %v351, %v494
      %v496 = vlaneseq
      %v497 = vshrl.u32 %v496, 7
      %v498 = vsub.s32 3, %v497
      %v499 = vrot.slane %v352, %v498
      %v500 = vmul.f32 %v347, %v495
      %v501 = vmul.f32 %v348, %v499
      %v502 = vmul.f32 %v349, %v495
      %v503 = vmul.f32 %v350, %v499
      %v504 = vsel %vm367, %v501, 0.0
      %v505 = vadd.f32 %v500, %v504
      %506 = vadd.xlane.f32.xlu0 %v505
      %v507 = vpop.xlane.xlu0 %506
      %v508 = vsel %vm367, %v503, 0.0
      %v509 = vadd.f32 %v502, %v508
      %510 = vadd.xlane.f32.xlu0 %v509
      %v511 = vpop.xlane.xlu0 %510
      %v512 = vmul.f32 %v507, 0.027777778
      %v513 = vmul.f32 %v511, 0.027777778
      %v514 = vlaneseq
      %v515 = vshrl.u32 %v514, 7
      %v516 = vsub.s32 3, %v515
      %v517 = vrot.slane %v380, %v516
      %v518 = vlaneseq
      %v519 = vshrl.u32 %v518, 7
      %v520 = vsub.s32 3, %v519
      %v521 = vrot.slane %v381, %v520
      %vm522 = vcmp.eq.s32.totalorder %v517, 1
      %vm523 = vcmp.eq.s32.totalorder %v521, 1
      %v524 = vsel %vm522, %v347, -3e+38
      %v525 = vsel %vm523, %v348, -3e+38
      %v526 = vsel %vm522, %v349, -3e+38
      %v527 = vsel %vm523, %v350, -3e+38
      %v528 = vsel %vm367, %v525, -inf
      %v529 = vmax.f32 %v524, %v528
      %530 = vmax.xlane.f32.xlu0 %v529
      %v531 = vpop.xlane.xlu0 %530
      %v532 = vsel %vm367, %v527, -inf
      %v533 = vmax.f32 %v526, %v532
      %534 = vmax.xlane.f32.xlu0 %v533
      %v535 = vpop.xlane.xlu0 %534
      %v536 = vlaneseq
      %v537 = vshrl.u32 %v536, 7
      %v538 = vsub.s32 4, %v537
      %v539 = vrot.slane %v351, %v538
      %v540 = vlaneseq
      %v541 = vshrl.u32 %v540, 7
      %v542 = vsub.s32 4, %v541
      %v543 = vrot.slane %v352, %v542
      %v544 = vmul.f32 %v347, %v539
      %v545 = vmul.f32 %v348, %v543
      %v546 = vmul.f32 %v349, %v539
      %v547 = vmul.f32 %v350, %v543
      %v548 = vsel %vm367, %v545, 0.0
      %v549 = vadd.f32 %v544, %v548
      %550 = vadd.xlane.f32.xlu0 %v549
      %v551 = vpop.xlane.xlu0 %550
      %v552 = vsel %vm367, %v547, 0.0
      %v553 = vadd.f32 %v546, %v552
      %554 = vadd.xlane.f32.xlu0 %v553
      %v555 = vpop.xlane.xlu0 %554
      %v556 = vmul.f32 %v551, 0.027777778
      %v557 = vmul.f32 %v555, 0.027777778
      %v558 = vlaneseq
      %v559 = vshrl.u32 %v558, 7
      %v560 = vsub.s32 4, %v559
      %v561 = vrot.slane %v380, %v560
      %v562 = vlaneseq
      %v563 = vshrl.u32 %v562, 7
      %v564 = vsub.s32 4, %v563
      %v565 = vrot.slane %v381, %v564
      %vm566 = vcmp.eq.s32.totalorder %v561, 1
      %vm567 = vcmp.eq.s32.totalorder %v565, 1
      %v568 = vsel %vm566, %v347, -3e+38
      %v569 = vsel %vm567, %v348, -3e+38
      %v570 = vsel %vm566, %v349, -3e+38
      %v571 = vsel %vm567, %v350, -3e+38
      %v572 = vsel %vm367, %v569, -inf
      %v573 = vmax.f32 %v568, %v572
      %574 = vmax.xlane.f32.xlu0 %v573
      %v575 = vpop.xlane.xlu0 %574
      %v576 = vsel %vm367, %v571, -inf
      %v577 = vmax.f32 %v570, %v576
      %578 = vmax.xlane.f32.xlu0 %v577
      %v579 = vpop.xlane.xlu0 %578
      %v580 = vlaneseq
      %v581 = vshrl.u32 %v580, 7
      %v582 = vsub.s32 5, %v581
      %v583 = vrot.slane %v351, %v582
      %v584 = vlaneseq
      %v585 = vshrl.u32 %v584, 7
      %v586 = vsub.s32 5, %v585
      %v587 = vrot.slane %v352, %v586
      %v588 = vmul.f32 %v347, %v583
      %v589 = vmul.f32 %v348, %v587
      %v590 = vmul.f32 %v349, %v583
      %v591 = vmul.f32 %v350, %v587
      %v592 = vsel %vm367, %v589, 0.0
      %v593 = vadd.f32 %v588, %v592
      %594 = vadd.xlane.f32.xlu0 %v593
      %v595 = vpop.xlane.xlu0 %594
      %v596 = vsel %vm367, %v591, 0.0
      %v597 = vadd.f32 %v590, %v596
      %598 = vadd.xlane.f32.xlu0 %v597
      %v599 = vpop.xlane.xlu0 %598
      %v600 = vmul.f32 %v595, 0.0625
      %v601 = vmul.f32 %v599, 0.0625
      %v602 = vlaneseq
      %v603 = vshrl.u32 %v602, 7
      %v604 = vsub.s32 5, %v603
      %v605 = vrot.slane %v380, %v604
      %v606 = vlaneseq
      %v607 = vshrl.u32 %v606, 7
      %v608 = vsub.s32 5, %v607
      %v609 = vrot.slane %v381, %v608
      %vm610 = vcmp.eq.s32.totalorder %v605, 1
      %vm611 = vcmp.eq.s32.totalorder %v609, 1
      %v612 = vsel %vm610, %v347, -3e+38
      %v613 = vsel %vm611, %v348, -3e+38
      %v614 = vsel %vm610, %v349, -3e+38
      %v615 = vsel %vm611, %v350, -3e+38
      %v616 = vsel %vm367, %v613, -inf
      %v617 = vmax.f32 %v612, %v616
      %618 = vmax.xlane.f32.xlu0 %v617
      %v619 = vpop.xlane.xlu0 %618
      %v620 = vsel %vm367, %v615, -inf
      %v621 = vmax.f32 %v614, %v620
      %622 = vmax.xlane.f32.xlu0 %v621
      %v623 = vpop.xlane.xlu0 %622
      %v624 = vlaneseq
      %v625 = vshrl.u32 %v624, 7
      %v626 = vsub.s32 6, %v625
      %v627 = vrot.slane %v351, %v626
      %v628 = vlaneseq
      %v629 = vshrl.u32 %v628, 7
      %v630 = vsub.s32 6, %v629
      %v631 = vrot.slane %v352, %v630
      %v632 = vmul.f32 %v347, %v627
      %v633 = vmul.f32 %v348, %v631
      %v634 = vmul.f32 %v349, %v627
      %v635 = vmul.f32 %v350, %v631
      %v636 = vsel %vm367, %v633, 0.0
      %v637 = vadd.f32 %v632, %v636
      %638 = vadd.xlane.f32.xlu0 %v637
      %v639 = vpop.xlane.xlu0 %638
      %v640 = vsel %vm367, %v635, 0.0
      %v641 = vadd.f32 %v634, %v640
      %642 = vadd.xlane.f32.xlu0 %v641
      %v643 = vpop.xlane.xlu0 %642
      %v644 = vmul.f32 %v639, 0.0625
      %v645 = vmul.f32 %v643, 0.0625
      %v646 = vlaneseq
      %v647 = vshrl.u32 %v646, 7
      %v648 = vsub.s32 6, %v647
      %v649 = vrot.slane %v380, %v648
      %v650 = vlaneseq
      %v651 = vshrl.u32 %v650, 7
      %v652 = vsub.s32 6, %v651
      %v653 = vrot.slane %v381, %v652
      %vm654 = vcmp.eq.s32.totalorder %v649, 1
      %vm655 = vcmp.eq.s32.totalorder %v653, 1
      %v656 = vsel %vm654, %v347, -3e+38
      %v657 = vsel %vm655, %v348, -3e+38
      %v658 = vsel %vm654, %v349, -3e+38
      %v659 = vsel %vm655, %v350, -3e+38
      %v660 = vsel %vm367, %v657, -inf
      %v661 = vmax.f32 %v656, %v660
      %662 = vmax.xlane.f32.xlu0 %v661
      %v663 = vpop.xlane.xlu0 %662
      %v664 = vsel %vm367, %v659, -inf
      %v665 = vmax.f32 %v658, %v664
      %666 = vmax.xlane.f32.xlu0 %v665
      %v667 = vpop.xlane.xlu0 %666
      %v668 = vlaneseq
      %v669 = vshrl.u32 %v668, 7
      %v670 = vsub.s32 7, %v669
      %v671 = vrot.slane %v351, %v670
      %v672 = vlaneseq
      %v673 = vshrl.u32 %v672, 7
      %v674 = vsub.s32 7, %v673
      %v675 = vrot.slane %v352, %v674
      %v676 = vmul.f32 %v347, %v671
      %v677 = vmul.f32 %v348, %v675
      %v678 = vmul.f32 %v349, %v671
      %v679 = vmul.f32 %v350, %v675
      %v680 = vsel %vm367, %v677, 0.0
      %v681 = vadd.f32 %v676, %v680
      %682 = vadd.xlane.f32.xlu0 %v681
      %v683 = vpop.xlane.xlu0 %682
      %v684 = vsel %vm367, %v679, 0.0
      %v685 = vadd.f32 %v678, %v684
      %686 = vadd.xlane.f32.xlu0 %v685
      %v687 = vpop.xlane.xlu0 %686
      %v688 = vmul.f32 %v683, 0.0625
      %v689 = vmul.f32 %v687, 0.0625
      %v690 = vlaneseq
      %v691 = vshrl.u32 %v690, 7
      %v692 = vsub.s32 7, %v691
      %v693 = vrot.slane %v380, %v692
      %v694 = vlaneseq
      %v695 = vshrl.u32 %v694, 7
      %v696 = vsub.s32 7, %v695
      %v697 = vrot.slane %v381, %v696
      %vm698 = vcmp.eq.s32.totalorder %v693, 1
      %vm699 = vcmp.eq.s32.totalorder %v697, 1
      %v700 = vsel %vm698, %v347, -3e+38
      %v701 = vsel %vm699, %v348, -3e+38
      %v702 = vsel %vm698, %v349, -3e+38
      %v703 = vsel %vm699, %v350, -3e+38
      %v704 = vsel %vm367, %v701, -inf
      %v705 = vmax.f32 %v700, %v704
      %706 = vmax.xlane.f32.xlu0 %v705
      %v707 = vpop.xlane.xlu0 %706
      %v708 = vsel %vm367, %v703, -inf
      %v709 = vmax.f32 %v702, %v708
      %710 = vmax.xlane.f32.xlu0 %v709
      %v711 = vpop.xlane.xlu0 %710
      %v712 = vlaneseq
      %v713 = vshrl.u32 %v712, 7
      %v714 = vsub.s32 0, %v713
      %v715 = vrot.slane %v353, %v714
      %v716 = vlaneseq
      %v717 = vshrl.u32 %v716, 7
      %v718 = vsub.s32 0, %v717
      %v719 = vrot.slane %v354, %v718
      %v720 = vmul.f32 %v347, %v715
      %v721 = vmul.f32 %v348, %v719
      %v722 = vmul.f32 %v349, %v715
      %v723 = vmul.f32 %v350, %v719
      %v724 = vsel %vm367, %v721, 0.0
      %v725 = vadd.f32 %v720, %v724
      %726 = vadd.xlane.f32.xlu0 %v725
      %v727 = vpop.xlane.xlu0 %726
      %v728 = vsel %vm367, %v723, 0.0
      %v729 = vadd.f32 %v722, %v728
      %730 = vadd.xlane.f32.xlu0 %v729
      %v731 = vpop.xlane.xlu0 %730
      %v732 = vmul.f32 %v727, 0.0625
      %v733 = vmul.f32 %v731, 0.0625
      %vm734 = vcmp.gt.f32.partialorder %v353, 0.5
      %vm735 = vcmp.gt.f32.partialorder %v354, 0.5
      %v736 = vsel %vm734, 1, 0
      %v737 = vsel %vm735, 1, 0
      %v738 = vlaneseq
      %v739 = vshrl.u32 %v738, 7
      %v740 = vsub.s32 0, %v739
      %v741 = vrot.slane %v736, %v740
      %v742 = vlaneseq
      %v743 = vshrl.u32 %v742, 7
      %v744 = vsub.s32 0, %v743
      %v745 = vrot.slane %v737, %v744
      %vm746 = vcmp.eq.s32.totalorder %v741, 1
      %vm747 = vcmp.eq.s32.totalorder %v745, 1
      %v748 = vsel %vm746, %v347, -3e+38
      %v749 = vsel %vm747, %v348, -3e+38
      %v750 = vsel %vm746, %v349, -3e+38
      %v751 = vsel %vm747, %v350, -3e+38
      %v752 = vsel %vm367, %v749, -inf
      %v753 = vmax.f32 %v748, %v752
      %754 = vmax.xlane.f32.xlu0 %v753
      %v755 = vpop.xlane.xlu0 %754
      %v756 = vsel %vm367, %v751, -inf
      %v757 = vmax.f32 %v750, %v756
      %758 = vmax.xlane.f32.xlu0 %v757
      %v759 = vpop.xlane.xlu0 %758
      %v760 = vlaneseq
      %v761 = vshrl.u32 %v760, 7
      %v762 = vsub.s32 1, %v761
      %v763 = vrot.slane %v353, %v762
      %v764 = vlaneseq
      %v765 = vshrl.u32 %v764, 7
      %v766 = vsub.s32 1, %v765
      %v767 = vrot.slane %v354, %v766
      %v768 = vmul.f32 %v347, %v763
      %v769 = vmul.f32 %v348, %v767
      %v770 = vmul.f32 %v349, %v763
      %v771 = vmul.f32 %v350, %v767
      %v772 = vsel %vm367, %v769, 0.0
      %v773 = vadd.f32 %v768, %v772
      %774 = vadd.xlane.f32.xlu0 %v773
      %v775 = vpop.xlane.xlu0 %774
      %v776 = vsel %vm367, %v771, 0.0
      %v777 = vadd.f32 %v770, %v776
      %778 = vadd.xlane.f32.xlu0 %v777
      %v779 = vpop.xlane.xlu0 %778
      %v780 = vmul.f32 %v775, 0.0625
      %v781 = vmul.f32 %v779, 0.0625
      %v782 = vlaneseq
      %v783 = vshrl.u32 %v782, 7
      %v784 = vsub.s32 1, %v783
      %v785 = vrot.slane %v736, %v784
      %v786 = vlaneseq
      %v787 = vshrl.u32 %v786, 7
      %v788 = vsub.s32 1, %v787
      %v789 = vrot.slane %v737, %v788
      %vm790 = vcmp.eq.s32.totalorder %v785, 1
      %vm791 = vcmp.eq.s32.totalorder %v789, 1
      %v792 = vsel %vm790, %v347, -3e+38
      %v793 = vsel %vm791, %v348, -3e+38
      %v794 = vsel %vm790, %v349, -3e+38
      %v795 = vsel %vm791, %v350, -3e+38
      %v796 = vsel %vm367, %v793, -inf
      %v797 = vmax.f32 %v792, %v796
      %798 = vmax.xlane.f32.xlu0 %v797
      %v799 = vpop.xlane.xlu0 %798
      %v800 = vsel %vm367, %v795, -inf
      %v801 = vmax.f32 %v794, %v800
      %802 = vmax.xlane.f32.xlu0 %v801
      %v803 = vpop.xlane.xlu0 %802
      %v804 = vlaneseq
      %v805 = vshrl.u32 %v804, 7
      %v806 = vsub.s32 2, %v805
      %v807 = vrot.slane %v353, %v806
      %v808 = vlaneseq
      %v809 = vshrl.u32 %v808, 7
      %v810 = vsub.s32 2, %v809
      %v811 = vrot.slane %v354, %v810
      %v812 = vmul.f32 %v347, %v807
      %v813 = vmul.f32 %v348, %v811
      %v814 = vmul.f32 %v349, %v807
      %v815 = vmul.f32 %v350, %v811
      %v816 = vsel %vm367, %v813, 0.0
      %v817 = vadd.f32 %v812, %v816
      %818 = vadd.xlane.f32.xlu0 %v817
      %v819 = vpop.xlane.xlu0 %818
      %v820 = vsel %vm367, %v815, 0.0
      %v821 = vadd.f32 %v814, %v820
      %822 = vadd.xlane.f32.xlu0 %v821
      %v823 = vpop.xlane.xlu0 %822
      %v824 = vmul.f32 %v819, 0.0625
      %v825 = vmul.f32 %v823, 0.0625
      %v826 = vlaneseq
      %v827 = vshrl.u32 %v826, 7
      %v828 = vsub.s32 2, %v827
      %v829 = vrot.slane %v736, %v828
      %v830 = vlaneseq
      %v831 = vshrl.u32 %v830, 7
      %v832 = vsub.s32 2, %v831
      %v833 = vrot.slane %v737, %v832
      %vm834 = vcmp.eq.s32.totalorder %v829, 1
      %vm835 = vcmp.eq.s32.totalorder %v833, 1
      %v836 = vsel %vm834, %v347, -3e+38
      %v837 = vsel %vm835, %v348, -3e+38
      %v838 = vsel %vm834, %v349, -3e+38
      %v839 = vsel %vm835, %v350, -3e+38
      %v840 = vsel %vm367, %v837, -inf
      %v841 = vmax.f32 %v836, %v840
      %842 = vmax.xlane.f32.xlu0 %v841
      %v843 = vpop.xlane.xlu0 %842
      %v844 = vsel %vm367, %v839, -inf
      %v845 = vmax.f32 %v838, %v844
      %846 = vmax.xlane.f32.xlu0 %v845
      %v847 = vpop.xlane.xlu0 %846
      %v848 = vlaneseq
      %v849 = vshrl.u32 %v848, 7
      %v850 = vsub.s32 3, %v849
      %v851 = vrot.slane %v353, %v850
      %v852 = vlaneseq
      %v853 = vshrl.u32 %v852, 7
      %v854 = vsub.s32 3, %v853
      %v855 = vrot.slane %v354, %v854
      %v856 = vmul.f32 %v347, %v851
      %v857 = vmul.f32 %v348, %v855
      %v858 = vmul.f32 %v349, %v851
      %v859 = vmul.f32 %v350, %v855
      %v860 = vsel %vm367, %v857, 0.0
      %v861 = vadd.f32 %v856, %v860
      %862 = vadd.xlane.f32.xlu0 %v861
      %v863 = vpop.xlane.xlu0 %862
      %v864 = vsel %vm367, %v859, 0.0
      %v865 = vadd.f32 %v858, %v864
      %866 = vadd.xlane.f32.xlu0 %v865
      %v867 = vpop.xlane.xlu0 %866
      %v868 = vmul.f32 %v863, 0.0625
      %v869 = vmul.f32 %v867, 0.0625
      %v870 = vlaneseq
      %v871 = vshrl.u32 %v870, 7
      %v872 = vsub.s32 3, %v871
      %v873 = vrot.slane %v736, %v872
      %v874 = vlaneseq
      %v875 = vshrl.u32 %v874, 7
      %v876 = vsub.s32 3, %v875
      %v877 = vrot.slane %v737, %v876
      %vm878 = vcmp.eq.s32.totalorder %v873, 1
      %vm879 = vcmp.eq.s32.totalorder %v877, 1
      %v880 = vsel %vm878, %v347, -3e+38
      %v881 = vsel %vm879, %v348, -3e+38
      %v882 = vsel %vm878, %v349, -3e+38
      %v883 = vsel %vm879, %v350, -3e+38
      %v884 = vsel %vm367, %v881, -inf
      %v885 = vmax.f32 %v880, %v884
      %886 = vmax.xlane.f32.xlu0 %v885
      %v887 = vpop.xlane.xlu0 %886
      %v888 = vsel %vm367, %v883, -inf
      %v889 = vmax.f32 %v882, %v888
      %890 = vmax.xlane.f32.xlu0 %v889
      %v891 = vpop.xlane.xlu0 %890
      %v892 = vlaneseq
      %v893 = vshrl.u32 %v892, 7
      %v894 = vsub.s32 4, %v893
      %v895 = vrot.slane %v353, %v894
      %v896 = vlaneseq
      %v897 = vshrl.u32 %v896, 7
      %v898 = vsub.s32 4, %v897
      %v899 = vrot.slane %v354, %v898
      %v900 = vmul.f32 %v347, %v895
      %v901 = vmul.f32 %v348, %v899
      %v902 = vmul.f32 %v349, %v895
      %v903 = vmul.f32 %v350, %v899
      %v904 = vsel %vm367, %v901, 0.0
      %v905 = vadd.f32 %v900, %v904
      %906 = vadd.xlane.f32.xlu0 %v905
      %v907 = vpop.xlane.xlu0 %906
      %v908 = vsel %vm367, %v903, 0.0
      %v909 = vadd.f32 %v902, %v908
      %910 = vadd.xlane.f32.xlu0 %v909
      %v911 = vpop.xlane.xlu0 %910
      %v912 = vmul.f32 %v907, 0.0625
      %v913 = vmul.f32 %v911, 0.0625
      %v914 = vlaneseq
      %v915 = vshrl.u32 %v914, 7
      %v916 = vsub.s32 4, %v915
      %v917 = vrot.slane %v736, %v916
      %v918 = vlaneseq
      %v919 = vshrl.u32 %v918, 7
      %v920 = vsub.s32 4, %v919
      %v921 = vrot.slane %v737, %v920
      %vm922 = vcmp.eq.s32.totalorder %v917, 1
      %vm923 = vcmp.eq.s32.totalorder %v921, 1
      %v924 = vsel %vm922, %v347, -3e+38
      %v925 = vsel %vm923, %v348, -3e+38
      %v926 = vsel %vm922, %v349, -3e+38
      %v927 = vsel %vm923, %v350, -3e+38
      %v928 = vsel %vm367, %v925, -inf
      %v929 = vmax.f32 %v924, %v928
      %930 = vmax.xlane.f32.xlu0 %v929
      %v931 = vpop.xlane.xlu0 %930
      %v932 = vsel %vm367, %v927, -inf
      %v933 = vmax.f32 %v926, %v932
      %934 = vmax.xlane.f32.xlu0 %v933
      %v935 = vpop.xlane.xlu0 %934
      %v936 = vlaneseq
      %v937 = vshrl.u32 %v936, 7
      %v938 = vsub.s32 5, %v937
      %v939 = vrot.slane %v353, %v938
      %v940 = vlaneseq
      %v941 = vshrl.u32 %v940, 7
      %v942 = vsub.s32 5, %v941
      %v943 = vrot.slane %v354, %v942
      %v944 = vmul.f32 %v347, %v939
      %v945 = vmul.f32 %v348, %v943
      %v946 = vmul.f32 %v349, %v939
      %v947 = vmul.f32 %v350, %v943
      %v948 = vsel %vm367, %v945, 0.0
      %v949 = vadd.f32 %v944, %v948
      %950 = vadd.xlane.f32.xlu0 %v949
      %v951 = vpop.xlane.xlu0 %950
      %v952 = vsel %vm367, %v947, 0.0
      %v953 = vadd.f32 %v946, %v952
      %954 = vadd.xlane.f32.xlu0 %v953
      %v955 = vpop.xlane.xlu0 %954
      %v956 = vmul.f32 %v951, 0.0625
      %v957 = vmul.f32 %v955, 0.0625
      %v958 = vlaneseq
      %v959 = vshrl.u32 %v958, 7
      %v960 = vsub.s32 5, %v959
      %v961 = vrot.slane %v736, %v960
      %v962 = vlaneseq
      %v963 = vshrl.u32 %v962, 7
      %v964 = vsub.s32 5, %v963
      %v965 = vrot.slane %v737, %v964
      %vm966 = vcmp.eq.s32.totalorder %v961, 1
      %vm967 = vcmp.eq.s32.totalorder %v965, 1
      %v968 = vsel %vm966, %v347, -3e+38
      %v969 = vsel %vm967, %v348, -3e+38
      %v970 = vsel %vm966, %v349, -3e+38
      %v971 = vsel %vm967, %v350, -3e+38
      %v972 = vsel %vm367, %v969, -inf
      %v973 = vmax.f32 %v968, %v972
      %974 = vmax.xlane.f32.xlu0 %v973
      %v975 = vpop.xlane.xlu0 %974
      %v976 = vsel %vm367, %v971, -inf
      %v977 = vmax.f32 %v970, %v976
      %978 = vmax.xlane.f32.xlu0 %v977
      %v979 = vpop.xlane.xlu0 %978
      %v982 = vlaneseq
      %v983 = vand.u32 %v982, 127
      %v984 = vlaneseq
      %v985 = vshrl.u32 %v984, 7
      %v986 = vsub.s32 %v983, %v985
      %v987 = vrot.slane %v376, %v986
      %v988 = vadd.s32 %v983, 4294967288
      %v989 = vlaneseq
      %v990 = vshrl.u32 %v989, 7
      %v991 = vsub.s32 %v988, %v990
      %v992 = vrot.slane %v377, %v991
      %vm993 = vcmask 130112
      %v994 = vsel %vm993, %v992, %v987
      %v998 = vadd.s32 %v983, 4294967280
      %v999 = vlaneseq
      %v1000 = vshrl.u32 %v999, 7
      %v1001 = vsub.s32 %v998, %v1000
      %v1002 = vrot.slane %v424, %v1001
      %v1003 = vadd.s32 %v983, 4294967272
      %v1004 = vlaneseq
      %v1005 = vshrl.u32 %v1004, 7
      %v1006 = vsub.s32 %v1003, %v1005
      %v1007 = vrot.slane %v425, %v1006
      %vm1008 = vcmask 261312
      %v1009 = vsel %vm1008, %v1007, %v1002
      %v1013 = vadd.s32 %v983, 4294967264
      %v1014 = vlaneseq
      %v1015 = vshrl.u32 %v1014, 7
      %v1016 = vsub.s32 %v1013, %v1015
      %v1017 = vrot.slane %v468, %v1016
      %v1018 = vadd.s32 %v983, 4294967256
      %v1019 = vlaneseq
      %v1020 = vshrl.u32 %v1019, 7
      %v1021 = vsub.s32 %v1018, %v1020
      %v1022 = vrot.slane %v469, %v1021
      %vm1023 = vcmask 392512
      %v1024 = vsel %vm1023, %v1022, %v1017
      %v1028 = vadd.s32 %v983, 4294967248
      %v1029 = vlaneseq
      %v1030 = vshrl.u32 %v1029, 7
      %v1031 = vsub.s32 %v1028, %v1030
      %v1032 = vrot.slane %v512, %v1031
      %v1033 = vadd.s32 %v983, 4294967240
      %v1034 = vlaneseq
      %v1035 = vshrl.u32 %v1034, 7
      %v1036 = vsub.s32 %v1033, %v1035
      %v1037 = vrot.slane %v513, %v1036
      %vm1038 = vcmask 523712
      %v1039 = vsel %vm1038, %v1037, %v1032
      %v1043 = vadd.s32 %v983, 4294967232
      %v1044 = vlaneseq
      %v1045 = vshrl.u32 %v1044, 7
      %v1046 = vsub.s32 %v1043, %v1045
      %v1047 = vrot.slane %v556, %v1046
      %v1048 = vadd.s32 %v983, 4294967224
      %v1049 = vlaneseq
      %v1050 = vshrl.u32 %v1049, 7
      %v1051 = vsub.s32 %v1048, %v1050
      %v1052 = vrot.slane %v557, %v1051
      %vm1053 = vcmask 654912
      %v1054 = vsel %vm1053, %v1052, %v1047
      %v1058 = vadd.s32 %v983, 4294967216
      %v1059 = vlaneseq
      %v1060 = vshrl.u32 %v1059, 7
      %v1061 = vsub.s32 %v1058, %v1060
      %v1062 = vrot.slane %v600, %v1061
      %v1063 = vadd.s32 %v983, 4294967208
      %v1064 = vlaneseq
      %v1065 = vshrl.u32 %v1064, 7
      %v1066 = vsub.s32 %v1063, %v1065
      %v1067 = vrot.slane %v601, %v1066
      %vm1068 = vcmask 786112
      %v1069 = vsel %vm1068, %v1067, %v1062
      %v1073 = vadd.s32 %v983, 4294967200
      %v1074 = vlaneseq
      %v1075 = vshrl.u32 %v1074, 7
      %v1076 = vsub.s32 %v1073, %v1075
      %v1077 = vrot.slane %v644, %v1076
      %v1078 = vadd.s32 %v983, 4294967192
      %v1079 = vlaneseq
      %v1080 = vshrl.u32 %v1079, 7
      %v1081 = vsub.s32 %v1078, %v1080
      %v1082 = vrot.slane %v645, %v1081
      %vm1083 = vcmask 917312
      %v1084 = vsel %vm1083, %v1082, %v1077
      %v1088 = vadd.s32 %v983, 4294967184
      %v1089 = vlaneseq
      %v1090 = vshrl.u32 %v1089, 7
      %v1091 = vsub.s32 %v1088, %v1090
      %v1092 = vrot.slane %v688, %v1091
      %v1093 = vadd.s32 %v983, 4294967176
      %v1094 = vlaneseq
      %v1095 = vshrl.u32 %v1094, 7
      %v1096 = vsub.s32 %v1093, %v1095
      %v1097 = vrot.slane %v689, %v1096
      %vm1098 = vcmask 1048512
      %v1099 = vsel %vm1098, %v1097, %v1092
      %v1103 = vlaneseq
      %v1104 = vshrl.u32 %v1103, 7
      %v1105 = vsub.s32 %v983, %v1104
      %v1106 = vrot.slane %v732, %v1105
      %v1107 = vlaneseq
      %v1108 = vshrl.u32 %v1107, 7
      %v1109 = vsub.s32 %v988, %v1108
      %v1110 = vrot.slane %v733, %v1109
      %v1111 = vsel %vm993, %v1110, %v1106
      %v1115 = vlaneseq
      %v1116 = vshrl.u32 %v1115, 7
      %v1117 = vsub.s32 %v998, %v1116
      %v1118 = vrot.slane %v780, %v1117
      %v1119 = vlaneseq
      %v1120 = vshrl.u32 %v1119, 7
      %v1121 = vsub.s32 %v1003, %v1120
      %v1122 = vrot.slane %v781, %v1121
      %v1123 = vsel %vm1008, %v1122, %v1118
      %v1127 = vlaneseq
      %v1128 = vshrl.u32 %v1127, 7
      %v1129 = vsub.s32 %v1013, %v1128
      %v1130 = vrot.slane %v824, %v1129
      %v1131 = vlaneseq
      %v1132 = vshrl.u32 %v1131, 7
      %v1133 = vsub.s32 %v1018, %v1132
      %v1134 = vrot.slane %v825, %v1133
      %v1135 = vsel %vm1023, %v1134, %v1130
      %v1139 = vlaneseq
      %v1140 = vshrl.u32 %v1139, 7
      %v1141 = vsub.s32 %v1028, %v1140
      %v1142 = vrot.slane %v868, %v1141
      %v1143 = vlaneseq
      %v1144 = vshrl.u32 %v1143, 7
      %v1145 = vsub.s32 %v1033, %v1144
      %v1146 = vrot.slane %v869, %v1145
      %v1147 = vsel %vm1038, %v1146, %v1142
      %v1151 = vlaneseq
      %v1152 = vshrl.u32 %v1151, 7
      %v1153 = vsub.s32 %v1043, %v1152
      %v1154 = vrot.slane %v912, %v1153
      %v1155 = vlaneseq
      %v1156 = vshrl.u32 %v1155, 7
      %v1157 = vsub.s32 %v1048, %v1156
      %v1158 = vrot.slane %v913, %v1157
      %v1159 = vsel %vm1053, %v1158, %v1154
      %v1163 = vlaneseq
      %v1164 = vshrl.u32 %v1163, 7
      %v1165 = vsub.s32 %v1058, %v1164
      %v1166 = vrot.slane %v956, %v1165
      %v1167 = vlaneseq
      %v1168 = vshrl.u32 %v1167, 7
      %v1169 = vsub.s32 %v1063, %v1168
      %v1170 = vrot.slane %v957, %v1169
      %v1171 = vsel %vm1068, %v1170, %v1166
      %v1175 = vlaneseq
      %v1176 = vshrl.u32 %v1175, 7
      %v1177 = vsub.s32 %v1073, %v1176
      %v1178 = vrot.slane %v399, %v1177
      %v1179 = vlaneseq
      %v1180 = vshrl.u32 %v1179, 7
      %v1181 = vsub.s32 %v1078, %v1180
      %v1182 = vrot.slane %v403, %v1181
      %v1183 = vsel %vm1083, %v1182, %v1178
      %v1187 = vlaneseq
      %v1188 = vshrl.u32 %v1187, 7
      %v1189 = vsub.s32 %v1088, %v1188
      %v1190 = vrot.slane %v443, %v1189
      %v1191 = vlaneseq
      %v1192 = vshrl.u32 %v1191, 7
      %v1193 = vsub.s32 %v1093, %v1192
      %v1194 = vrot.slane %v447, %v1193
      %v1195 = vsel %vm1098, %v1194, %v1190
      %v1197 = vsel %vm367, %v994, %v1009
      %vm1198 = vcmask 261120
      %v1199 = vsel %vm1198, %v1197, %v1024
      %vm1200 = vcmask 392192
      %v1201 = vsel %vm1200, %v1199, %v1039
      %vm1202 = vcmask 523264
      %v1203 = vsel %vm1202, %v1201, %v1054
      %vm1204 = vcmask 654336
      %v1205 = vsel %vm1204, %v1203, %v1069
      %vm1206 = vcmask 785408
      %v1207 = vsel %vm1206, %v1205, %v1084
      %vm1208 = vcmask 916480
      %v1209 = vsel %vm1208, %v1207, %v1099
      %v1210 = vsel %vm367, %v1111, %v1123
      %v1211 = vsel %vm1198, %v1210, %v1135
      %v1212 = vsel %vm1200, %v1211, %v1147
      %v1213 = vsel %vm1202, %v1212, %v1159
      %v1214 = vsel %vm1204, %v1213, %v1171
      %v1215 = vsel %vm1206, %v1214, %v1183
      %v1216 = vsel %vm1208, %v1215, %v1195
      %v1219 = vlaneseq
      %v1220 = vshrl.u32 %v1219, 7
      %v1221 = vsub.s32 %v983, %v1220
      %v1222 = vrot.slane %v487, %v1221
      %v1223 = vlaneseq
      %v1224 = vshrl.u32 %v1223, 7
      %v1225 = vsub.s32 %v988, %v1224
      %v1226 = vrot.slane %v491, %v1225
      %v1227 = vsel %vm993, %v1226, %v1222
      %v1231 = vlaneseq
      %v1232 = vshrl.u32 %v1231, 7
      %v1233 = vsub.s32 %v998, %v1232
      %v1234 = vrot.slane %v531, %v1233
      %v1235 = vlaneseq
      %v1236 = vshrl.u32 %v1235, 7
      %v1237 = vsub.s32 %v1003, %v1236
      %v1238 = vrot.slane %v535, %v1237
      %v1239 = vsel %vm1008, %v1238, %v1234
      %v1243 = vlaneseq
      %v1244 = vshrl.u32 %v1243, 7
      %v1245 = vsub.s32 %v1013, %v1244
      %v1246 = vrot.slane %v575, %v1245
      %v1247 = vlaneseq
      %v1248 = vshrl.u32 %v1247, 7
      %v1249 = vsub.s32 %v1018, %v1248
      %v1250 = vrot.slane %v579, %v1249
      %v1251 = vsel %vm1023, %v1250, %v1246
      %v1255 = vlaneseq
      %v1256 = vshrl.u32 %v1255, 7
      %v1257 = vsub.s32 %v1028, %v1256
      %v1258 = vrot.slane %v619, %v1257
      %v1259 = vlaneseq
      %v1260 = vshrl.u32 %v1259, 7
      %v1261 = vsub.s32 %v1033, %v1260
      %v1262 = vrot.slane %v623, %v1261
      %v1263 = vsel %vm1038, %v1262, %v1258
      %v1267 = vlaneseq
      %v1268 = vshrl.u32 %v1267, 7
      %v1269 = vsub.s32 %v1043, %v1268
      %v1270 = vrot.slane %v663, %v1269
      %v1271 = vlaneseq
      %v1272 = vshrl.u32 %v1271, 7
      %v1273 = vsub.s32 %v1048, %v1272
      %v1274 = vrot.slane %v667, %v1273
      %v1275 = vsel %vm1053, %v1274, %v1270
      %v1279 = vlaneseq
      %v1280 = vshrl.u32 %v1279, 7
      %v1281 = vsub.s32 %v1058, %v1280
      %v1282 = vrot.slane %v707, %v1281
      %v1283 = vlaneseq
      %v1284 = vshrl.u32 %v1283, 7
      %v1285 = vsub.s32 %v1063, %v1284
      %v1286 = vrot.slane %v711, %v1285
      %v1287 = vsel %vm1068, %v1286, %v1282
      %v1291 = vlaneseq
      %v1292 = vshrl.u32 %v1291, 7
      %v1293 = vsub.s32 %v1073, %v1292
      %v1294 = vrot.slane %v755, %v1293
      %v1295 = vlaneseq
      %v1296 = vshrl.u32 %v1295, 7
      %v1297 = vsub.s32 %v1078, %v1296
      %v1298 = vrot.slane %v759, %v1297
      %v1299 = vsel %vm1083, %v1298, %v1294
      %v1303 = vlaneseq
      %v1304 = vshrl.u32 %v1303, 7
      %v1305 = vsub.s32 %v1088, %v1304
      %v1306 = vrot.slane %v799, %v1305
      %v1307 = vlaneseq
      %v1308 = vshrl.u32 %v1307, 7
      %v1309 = vsub.s32 %v1093, %v1308
      %v1310 = vrot.slane %v803, %v1309
      %v1311 = vsel %vm1098, %v1310, %v1306
      %v1315 = vlaneseq
      %v1316 = vshrl.u32 %v1315, 7
      %v1317 = vsub.s32 %v983, %v1316
      %v1318 = vrot.slane %v843, %v1317
      %v1319 = vlaneseq
      %v1320 = vshrl.u32 %v1319, 7
      %v1321 = vsub.s32 %v988, %v1320
      %v1322 = vrot.slane %v847, %v1321
      %v1323 = vsel %vm993, %v1322, %v1318
      %v1327 = vlaneseq
      %v1328 = vshrl.u32 %v1327, 7
      %v1329 = vsub.s32 %v998, %v1328
      %v1330 = vrot.slane %v887, %v1329
      %v1331 = vlaneseq
      %v1332 = vshrl.u32 %v1331, 7
      %v1333 = vsub.s32 %v1003, %v1332
      %v1334 = vrot.slane %v891, %v1333
      %v1335 = vsel %vm1008, %v1334, %v1330
      %v1339 = vlaneseq
      %v1340 = vshrl.u32 %v1339, 7
      %v1341 = vsub.s32 %v1013, %v1340
      %v1342 = vrot.slane %v931, %v1341
      %v1343 = vlaneseq
      %v1344 = vshrl.u32 %v1343, 7
      %v1345 = vsub.s32 %v1018, %v1344
      %v1346 = vrot.slane %v935, %v1345
      %v1347 = vsel %vm1023, %v1346, %v1342
      %v1351 = vlaneseq
      %v1352 = vshrl.u32 %v1351, 7
      %v1353 = vsub.s32 %v1028, %v1352
      %v1354 = vrot.slane %v975, %v1353
      %v1355 = vlaneseq
      %v1356 = vshrl.u32 %v1355, 7
      %v1357 = vsub.s32 %v1033, %v1356
      %v1358 = vrot.slane %v979, %v1357
      %v1359 = vsel %vm1038, %v1358, %v1354
      %v1361 = vsel %vm367, %v1227, %v1239
      %v1362 = vsel %vm1198, %v1361, %v1251
      %v1363 = vsel %vm1200, %v1362, %v1263
      %v1364 = vsel %vm1202, %v1363, %v1275
      %v1365 = vsel %vm1204, %v1364, %v1287
      %v1366 = vsel %vm1206, %v1365, %v1299
      %v1367 = vsel %vm1208, %v1366, %v1311
      %v1368 = vsel %vm367, %v1323, %v1335
      %v1369 = vsel %vm1198, %v1368, %v1347
      %v1370 = vsel %vm1200, %v1369, %v1359
      %v1371 = vld [vmem:[%s2] sm:$0xff]
      %v1372 = vld [vmem:[%s2 + $0x8] sm:$0xff]
      %v1373 = vld [vmem:[%s2 + $0x10] sm:$0xff]
      %v1374 = vld [vmem:[%s2 + $0x18] sm:$0xff]
      %v1375 = vld [vmem:[%s2 + $0x20] sm:$0xff]
      %v1376 = vld [vmem:[%s2 + $0x28] sm:$0xff]
      %v1377 = vld [vmem:[%s2 + $0x30] sm:$0xff]
      %v1378 = vld [vmem:[%s2 + $0x38] sm:$0xff]
      %v1379 = vld [vmem:[%s2 + $0x40] sm:$0xff]
      %v1380 = vld [vmem:[%s2 + $0x48] sm:$0xff]
      %v1381 = vld [vmem:[%s2 + $0x50] sm:$0xff]
      %v1382 = vld [vmem:[%s2 + $0x58] sm:$0xff]
      %v1383 = vld [vmem:[%s2 + $0x60] sm:$0xff]
      %v1384 = vld [vmem:[%s2 + $0x68] sm:$0xff]
      %v1385 = vld [vmem:[%s2 + $0x70] sm:$0xff]
      %v1386 = vld [vmem:[%s2 + $0x78] sm:$0xff]
      %v1387 = vld [vmem:[%s2 + $0x80] sm:$0xff]
      %v1388 = vld [vmem:[%s2 + $0x88] sm:$0xff]
      %v1389 = vld [vmem:[%s2 + $0x90] sm:$0xff]
      %v1390 = vld [vmem:[%s2 + $0x98] sm:$0xff]
      %v1391 = vld [vmem:[%s2 + $0xa0] sm:$0xff]
      %v1392 = vld [vmem:[%s2 + $0xa8] sm:$0xff]
      %v1393 = vld [vmem:[%s2 + $0xb0] sm:$0xff]
      %v1394 = vld [vmem:[%s2 + $0xb8] sm:$0xff]
      %v1395 = vld [vmem:[%s2 + $0xc0] sm:$0xff]
      %v1396 = vld [vmem:[%s2 + $0xc8] sm:$0xff]
      %v1397 = vld [vmem:[%s2 + $0xd0] sm:$0xff]
      %v1398 = vld [vmem:[%s2 + $0xd8] sm:$0xff]
      %v1399 = vld [vmem:[%s2 + $0xe0] sm:$0xff]
      %v1400 = vld [vmem:[%s2 + $0xe8] sm:$0xff]
      %v1401 = vld [vmem:[%s2 + $0xf0] sm:$0xff]
      %v1402 = vld [vmem:[%s2 + $0xf8] sm:$0xff]
      %v1403 = vld [vmem:[%s2 + $0x100] sm:$0xff]
      %v1404 = vld [vmem:[%s2 + $0x108] sm:$0xff]
      %v1405 = vld [vmem:[%s2 + $0x110] sm:$0xff]
      %v1406 = vld [vmem:[%s2 + $0x118] sm:$0xff]
      %v1407 = vld [vmem:[%s2 + $0x120] sm:$0xff]
      %v1408 = vld [vmem:[%s2 + $0x128] sm:$0xff]
      %v1409 = vld [vmem:[%s2 + $0x130] sm:$0xff]
      %v1410 = vld [vmem:[%s2 + $0x138] sm:$0xff]
      %v1411 = vld [vmem:[%s2 + $0x140] sm:$0xff]
      %v1412 = vld [vmem:[%s2 + $0x148] sm:$0xff]
      %v1413 = vld [vmem:[%s2 + $0x150] sm:$0xff]
      %v1414 = vld [vmem:[%s2 + $0x158] sm:$0xff]
      %v1415 = vld [vmem:[%s2 + $0x160] sm:$0xff]
      %v1416 = vld [vmem:[%s2 + $0x168] sm:$0xff]
      %v1417 = vld [vmem:[%s2 + $0x170] sm:$0xff]
      %v1418 = vld [vmem:[%s2 + $0x178] sm:$0xff]
      %v1419 = vld [vmem:[%s2 + $0x180] sm:$0xff]
      %v1420 = vld [vmem:[%s2 + $0x188] sm:$0xff]
      %v1421 = vld [vmem:[%s2 + $0x190] sm:$0xff]
      %v1422 = vld [vmem:[%s2 + $0x198] sm:$0xff]
      %v1423 = vld [vmem:[%s2 + $0x1a0] sm:$0xff]
      %v1424 = vld [vmem:[%s2 + $0x1a8] sm:$0xff]
      %v1425 = vld [vmem:[%s2 + $0x1b0] sm:$0xff]
      %v1426 = vld [vmem:[%s2 + $0x1b8] sm:$0xff]
      %v1428 = vsel %vm1202, %v1370, 0
      %1430 = vmatprep.subr.mxu0 0.0
      %1431 = vmatpush1.msra.mxu0 %v1371
      %1432 = vmatprep.subr.mxu0 0.0
      %1433 = vmatpush1.msra.mxu0 %v1372
      %1434 = vmatprep.subr.mxu0 0.0
      %1435 = vmatpush1.msra.mxu0 %v1373
      %1436 = vmatprep.subr.mxu0 0.0
      %1437 = vmatpush1.msra.mxu0 %v1374
      %1438 = vmatprep.subr.mxu0 0.0
      %1439 = vmatpush1.msra.mxu0 %v1375
      %1440 = vmatprep.subr.mxu0 0.0
      %1441 = vmatpush1.msra.mxu0 %v1376
      %1442 = vmatprep.subr.mxu0 0.0
      %1443 = vmatpush1.msra.mxu0 %v1377
      %1444 = vmatprep.subr.mxu0 0.0
      %1445 = vmatpush1.msra.mxu0 %v1378
      %1446 = vmatprep.subr.mxu0 0.0
      %1447 = vmatpush1.msra.mxu0 %v1379
      %1448 = vmatprep.subr.mxu0 0.0
      %1449 = vmatpush1.msra.mxu0 %v1380
      %1450 = vmatprep.subr.mxu0 0.0
      %1451 = vmatpush1.msra.mxu0 %v1381
      %1452 = vmatprep.subr.mxu0 0.0
      %1453 = vmatpush1.msra.mxu0 %v1382
      %1454 = vmatprep.subr.mxu0 0.0
      %1455 = vmatpush1.msra.mxu0 %v1383
      %1456 = vmatprep.subr.mxu0 0.0
      %1457 = vmatpush1.msra.mxu0 %v1384
      %1458 = vmatprep.subr.mxu0 0.0
      %1459 = vmatpush1.msra.mxu0 %v1385
      %1460 = vmatprep.subr.mxu0 0.0
      %1461 = vmatpush1.msra.mxu0 %v1386
      %1462 = vmatprep.subr.mxu0 0.0
      %1463 = vmatpush1.msra.mxu0 %v1387
      %1464 = vmatprep.subr.mxu0 0.0
      %1465 = vmatpush1.msra.mxu0 %v1388
      %1466 = vmatprep.subr.mxu0 0.0
      %1467 = vmatpush1.msra.mxu0 %v1389
      %1468 = vmatprep.subr.mxu0 0.0
      %1469 = vmatpush1.msra.mxu0 %v1390
      %1470 = vmatprep.subr.mxu0 0.0
      %1471 = vmatpush1.msra.mxu0 %v1391
      %1472 = vmatprep.subr.mxu0 0.0
      %1473 = vmatpush1.msra.mxu0 %v1392
      %1474 = vmatprep.subr.mxu0 0.0
      %1475 = vmatpush1.msra.mxu0 %v1393
      %1476 = vmatprep.subr.mxu0 0.0
      %1477 = vmatpush1.msra.mxu0 %v1394
      %1478 = vmatprep.subr.mxu0 0.0
      %1479 = vmatpush1.msra.mxu0 %v1395
      %1480 = vmatprep.subr.mxu0 0.0
      %1481 = vmatpush1.msra.mxu0 %v1396
      %1482 = vmatprep.subr.mxu0 0.0
      %1483 = vmatpush1.msra.mxu0 %v1397
      %1484 = vmatprep.subr.mxu0 0.0
      %1485 = vmatpush1.msra.mxu0 %v1398
      %1486 = vmatprep.subr.mxu0 0.0
      %1487 = vmatpush1.msra.mxu0 %v1399
      %1488 = vmatprep.subr.mxu0 0.0
      %1489 = vmatpush1.msra.mxu0 %v1400
      %1490 = vmatprep.subr.mxu0 0.0
      %1491 = vmatpush1.msra.mxu0 %v1401
      %1492 = vmatprep.subr.mxu0 0.0
      %1493 = vmatpush1.msra.mxu0 %v1402
      %1494 = vmatprep.mubr.f32.mxu0 %v1216
      %1495 = vmatmul.mubr.f32.gmra.mrb[0].mxu0 %v1209
      %v1496 = vpop.f32.mrb[0].mxu0
      %v1497 = vadd.f32 0.0, %v1496
      %v1498 = vpop.f32.mrb[0].mxu0
      %1499 = vdwg.mxu0
      %1500 = vmatprep.subr.mxu0 0.0
      %1501 = vmatpush1.msra.mxu0 %v1403
      %1502 = vmatprep.subr.mxu0 0.0
      %1503 = vmatpush1.msra.mxu0 %v1404
      %1504 = vmatprep.subr.mxu0 0.0
      %1505 = vmatpush1.msra.mxu0 %v1405
      %1506 = vmatprep.subr.mxu0 0.0
      %1507 = vmatpush1.msra.mxu0 %v1406
      %1508 = vmatprep.subr.mxu0 0.0
      %1509 = vmatpush1.msra.mxu0 %v1407
      %1510 = vmatprep.subr.mxu0 0.0
      %1511 = vmatpush1.msra.mxu0 %v1408
      %1512 = vmatprep.subr.mxu0 0.0
      %1513 = vmatpush1.msra.mxu0 %v1409
      %1514 = vmatprep.subr.mxu0 0.0
      %1515 = vmatpush1.msra.mxu0 %v1410
      %1516 = vmatprep.subr.mxu0 0.0
      %1517 = vmatpush1.msra.mxu0 %v1411
      %1518 = vmatprep.subr.mxu0 0.0
      %1519 = vmatpush1.msra.mxu0 %v1412
      %1520 = vmatprep.subr.mxu0 0.0
      %1521 = vmatpush1.msra.mxu0 %v1413
      %1522 = vmatprep.subr.mxu0 0.0
      %1523 = vmatpush1.msra.mxu0 %v1414
      %1524 = vmatprep.subr.mxu0 0.0
      %1525 = vmatpush1.msra.mxu0 %v1415
      %1526 = vmatprep.subr.mxu0 0.0
      %1527 = vmatpush1.msra.mxu0 %v1416
      %1528 = vmatprep.subr.mxu0 0.0
      %1529 = vmatpush1.msra.mxu0 %v1417
      %1530 = vmatprep.subr.mxu0 0.0
      %1531 = vmatpush1.msra.mxu0 %v1418
      %1532 = vmatprep.subr.mxu0 0.0
      %1533 = vmatpush1.msra.mxu0 %v1419
      %1534 = vmatprep.subr.mxu0 0.0
      %1535 = vmatpush1.msra.mxu0 %v1420
      %1536 = vmatprep.subr.mxu0 0.0
      %1537 = vmatpush1.msra.mxu0 %v1421
      %1538 = vmatprep.subr.mxu0 0.0
      %1539 = vmatpush1.msra.mxu0 %v1422
      %1540 = vmatprep.subr.mxu0 0.0
      %1541 = vmatpush1.msra.mxu0 %v1423
      %1542 = vmatprep.subr.mxu0 0.0
      %1543 = vmatpush1.msra.mxu0 %v1424
      %1544 = vmatprep.subr.mxu0 0.0
      %1545 = vmatpush1.msra.mxu0 %v1425
      %1546 = vmatprep.subr.mxu0 0.0
      %1547 = vmatpush1.msra.mxu0 %v1426
      %1548 = vmatprep.subr.mxu0 0.0
      %1549 = vmatpush1.msra.mxu0 0.0
      %1550 = vmatprep.subr.mxu0 0.0
      %1551 = vmatpush1.msra.mxu0 0.0
      %1552 = vmatprep.subr.mxu0 0.0
      %1553 = vmatpush1.msra.mxu0 0.0
      %1554 = vmatprep.subr.mxu0 0.0
      %1555 = vmatpush1.msra.mxu0 0.0
      %1556 = vmatprep.subr.mxu0 0.0
      %1557 = vmatpush1.msra.mxu0 0.0
      %1558 = vmatprep.subr.mxu0 0.0
      %1559 = vmatpush1.msra.mxu0 0.0
      %1560 = vmatprep.subr.mxu0 0.0
      %1561 = vmatpush1.msra.mxu0 0.0
      %1562 = vmatprep.subr.mxu0 0.0
      %1563 = vmatpush1.msra.mxu0 0.0
      %1564 = vmatprep.mubr.f32.mxu0 %v1428
      %1565 = vmatmul.mubr.f32.gmra.mrb[0].mxu0 %v1367
      %v1566 = vpop.f32.mrb[0].mxu0
      %v1567 = vadd.f32 %v1497, %v1566
      %v1568 = vpop.f32.mrb[0].mxu0
      %1569 = vdwg.mxu0
      %v1570 = vmax.f32 %v1567, 0.0
      %v1571 = vld [vmem:[%s3] sm:$0xff]
      %v1572 = vld [vmem:[%s3 + $0x8] sm:$0xff]
      %v1573 = vld [vmem:[%s3 + $0x10] sm:$0xff]
      %v1574 = vld [vmem:[%s3 + $0x18] sm:$0xf]
      %v1575 = vld [vmem:[%s4] sm:$0x1]
      %vm1576 = vcmask 228352
      %v1578 = vsel %vm1576, %v1570, 0
      %vm1580 = vcmask 1043456
      %v1582 = vsel %vm1580, %v1574, 0
      %1584 = vmatprep.subr.mxu0 0.0
      %1585 = vmatpush1.msra.mxu0 %v1571
      %1586 = vmatprep.subr.mxu0 0.0
      %1587 = vmatpush1.msra.mxu0 %v1572
      %1588 = vmatprep.subr.mxu0 0.0
      %1589 = vmatpush1.msra.mxu0 %v1573
      %1590 = vmatprep.subr.mxu0 0.0
      %1591 = vmatpush1.msra.mxu0 %v1582
      %1592 = vmatprep.subr.mxu0 0.0
      %1593 = vmatpush1.msra.mxu0 0.0
      %1594 = vmatprep.subr.mxu0 0.0
      %1595 = vmatpush1.msra.mxu0 0.0
      %1596 = vmatprep.subr.mxu0 0.0
      %1597 = vmatpush1.msra.mxu0 0.0
      %1598 = vmatprep.subr.mxu0 0.0
      %1599 = vmatpush1.msra.mxu0 0.0
      %1600 = vmatprep.subr.mxu0 0.0
      %1601 = vmatpush1.msra.mxu0 0.0
      %1602 = vmatprep.subr.mxu0 0.0
      %1603 = vmatpush1.msra.mxu0 0.0
      %1604 = vmatprep.subr.mxu0 0.0
      %1605 = vmatpush1.msra.mxu0 0.0
      %1606 = vmatprep.subr.mxu0 0.0
      %1607 = vmatpush1.msra.mxu0 0.0
      %1608 = vmatprep.subr.mxu0 0.0
      %1609 = vmatpush1.msra.mxu0 0.0
      %1610 = vmatprep.subr.mxu0 0.0
      %1611 = vmatpush1.msra.mxu0 0.0
      %1612 = vmatprep.subr.mxu0 0.0
      %1613 = vmatpush1.msra.mxu0 0.0
      %1614 = vmatprep.subr.mxu0 0.0
      %1615 = vmatpush1.msra.mxu0 0.0
      %1616 = vmatprep.subr.mxu0 0.0
      %1617 = vmatpush1.msra.mxu0 0.0
      %1618 = vmatprep.subr.mxu0 0.0
      %1619 = vmatpush1.msra.mxu0 0.0
      %1620 = vmatprep.subr.mxu0 0.0
      %1621 = vmatpush1.msra.mxu0 0.0
      %1622 = vmatprep.subr.mxu0 0.0
      %1623 = vmatpush1.msra.mxu0 0.0
      %1624 = vmatprep.subr.mxu0 0.0
      %1625 = vmatpush1.msra.mxu0 0.0
      %1626 = vmatprep.subr.mxu0 0.0
      %1627 = vmatpush1.msra.mxu0 0.0
      %1628 = vmatprep.subr.mxu0 0.0
      %1629 = vmatpush1.msra.mxu0 0.0
      %1630 = vmatprep.subr.mxu0 0.0
      %1631 = vmatpush1.msra.mxu0 0.0
      %1632 = vmatprep.subr.mxu0 0.0
      %1633 = vmatpush1.msra.mxu0 0.0
      %1634 = vmatprep.subr.mxu0 0.0
      %1635 = vmatpush1.msra.mxu0 0.0
      %1636 = vmatprep.subr.mxu0 0.0
      %1637 = vmatpush1.msra.mxu0 0.0
      %1638 = vmatprep.subr.mxu0 0.0
      %1639 = vmatpush1.msra.mxu0 0.0
      %1640 = vmatprep.subr.mxu0 0.0
      %1641 = vmatpush1.msra.mxu0 0.0
      %1642 = vmatprep.subr.mxu0 0.0
      %1643 = vmatpush1.msra.mxu0 0.0
      %1644 = vmatprep.subr.mxu0 0.0
      %1645 = vmatpush1.msra.mxu0 0.0
      %1646 = vmatprep.subr.mxu0 0.0
      %1647 = vmatpush1.msra.mxu0 0.0
      %1648 = vmatprep.mubr.f32.mxu0 0.0
      %1649 = vmatmul.mubr.f32.gmra.mrb[0].mxu0 %v1578
      %v1650 = vpop.f32.mrb[0].mxu0
      %v1651 = vadd.f32 %v1575, %v1650
      %v1652 = vpop.f32.mrb[0].mxu0
      %1653 = vdwg.mxu0
      %v1654 = vxor.u32 %v1651, 2147483648
      %v1655 = vmul.f32 %v1654, 1.442695
      %v1656 = vpow.pop %v1655
      %v1657 = vadd.f32 %v1656, 1.0
      %v1658 = vrcp.pop %v1657
      %v1659 = vmul.f32 1.0, %v1658
      %v1660 = vmax.f32 %v347, %v349
      %v1661 = vrot.slane %v1660, 4
      %v1662 = vmax.f32 %v1660, %v1661
      %v1663 = vrot.slane %v1662, 2
      %v1664 = vmax.f32 %v1662, %v1663
      %v1665 = vrot.slane %v1664, 1
      %v1666 = vmax.f32 %v1664, %v1665
      %v1667 = vsel %vm367, %v348, -inf
      %v1668 = vsel %vm367, %v350, -inf
      %v1669 = vmax.f32 %v1667, %v1668
      %v1670 = vrot.slane %v1669, 4
      %v1671 = vmax.f32 %v1669, %v1670
      %v1672 = vrot.slane %v1671, 2
      %v1673 = vmax.f32 %v1671, %v1672
      %v1674 = vrot.slane %v1673, 1
      %v1675 = vmax.f32 %v1673, %v1674
      %v1676 = vadd.f32 %v347, %v349
      %v1677 = vrot.slane %v1676, 4
      %v1678 = vadd.f32 %v1676, %v1677
      %v1679 = vrot.slane %v1678, 2
      %v1680 = vadd.f32 %v1678, %v1679
      %v1681 = vrot.slane %v1680, 1
      %v1682 = vadd.f32 %v1680, %v1681
      %v1683 = vsel %vm367, %v348, 0.0
      %v1684 = vsel %vm367, %v350, 0.0
      %v1685 = vadd.f32 %v1683, %v1684
      %v1686 = vrot.slane %v1685, 4
      %v1687 = vadd.f32 %v1685, %v1686
      %v1688 = vrot.slane %v1687, 2
      %v1689 = vadd.f32 %v1687, %v1688
      %v1690 = vrot.slane %v1689, 1
      %v1691 = vadd.f32 %v1689, %v1690
      %v1692 = vrcp.pop 16.0
      %v1693 = vmul.f32 %v1682, %v1692
      %v1694 = vmul.f32 %v1691, %v1692
      %1697 = vrot.lane.b32.xlu0 %v1693, 16
      %v1698 = vpop.permute.xlu0 %1697
      %1699 = vrot.lane.b32.xlu0 %v1694, 16
      %v1700 = vpop.permute.xlu0 %1699
      %v1701 = vsel %vm367, %v1698, %v1700
      %v1703 = vsel %vm367, %v1675, %v1698
      %v1704 = vld [vmem:[%s5] sm:$0xff]
      %v1705 = vld [vmem:[%s5 + $0x8] sm:$0xff]
      %v1706 = vld [vmem:[%s5 + $0x10] sm:$0xff]
      %v1707 = vld [vmem:[%s5 + $0x18] sm:$0xff]
      %v1708 = vld [vmem:[%s5 + $0x20] sm:$0xff]
      %v1709 = vld [vmem:[%s5 + $0x28] sm:$0xff]
      %v1710 = vld [vmem:[%s5 + $0x30] sm:$0xff]
      %v1711 = vld [vmem:[%s5 + $0x38] sm:$0xff]
      %v1712 = vld [vmem:[%s5 + $0x40] sm:$0xff]
      %v1713 = vld [vmem:[%s5 + $0x48] sm:$0xff]
      %v1714 = vld [vmem:[%s5 + $0x50] sm:$0xff]
      %v1715 = vld [vmem:[%s5 + $0x58] sm:$0xff]
      %v1716 = vld [vmem:[%s5 + $0x60] sm:$0xff]
      %v1717 = vld [vmem:[%s5 + $0x68] sm:$0xff]
      %v1718 = vld [vmem:[%s5 + $0x70] sm:$0xff]
      %v1719 = vld [vmem:[%s5 + $0x78] sm:$0xff]
      %v1720 = vld [vmem:[%s5 + $0x80] sm:$0xff]
      %v1721 = vld [vmem:[%s5 + $0x88] sm:$0xff]
      %v1722 = vld [vmem:[%s5 + $0x90] sm:$0xff]
      %v1723 = vld [vmem:[%s5 + $0x98] sm:$0xff]
      %v1724 = vld [vmem:[%s5 + $0xa0] sm:$0xff]
      %v1725 = vld [vmem:[%s5 + $0xa8] sm:$0xff]
      %v1726 = vld [vmem:[%s5 + $0xb0] sm:$0xff]
      %v1727 = vld [vmem:[%s5 + $0xb8] sm:$0xff]
      %v1728 = vld [vmem:[%s5 + $0xc0] sm:$0xff]
      %v1729 = vld [vmem:[%s5 + $0xc8] sm:$0xff]
      %v1730 = vld [vmem:[%s5 + $0xd0] sm:$0xff]
      %v1731 = vld [vmem:[%s5 + $0xd8] sm:$0xff]
      %v1732 = vld [vmem:[%s5 + $0xe0] sm:$0xff]
      %v1733 = vld [vmem:[%s5 + $0xe8] sm:$0xff]
      %v1734 = vld [vmem:[%s5 + $0xf0] sm:$0xff]
      %v1735 = vld [vmem:[%s5 + $0xf8] sm:$0xff]
      %v1736 = vld [vmem:[%s5 + $0x100] sm:$0xff]
      %v1737 = vld [vmem:[%s5 + $0x108] sm:$0xff]
      %v1738 = vld [vmem:[%s5 + $0x110] sm:$0xff]
      %v1739 = vld [vmem:[%s5 + $0x118] sm:$0xff]
      %v1740 = vld [vmem:[%s5 + $0x120] sm:$0xff]
      %v1741 = vld [vmem:[%s5 + $0x128] sm:$0xff]
      %v1742 = vld [vmem:[%s5 + $0x130] sm:$0xff]
      %v1743 = vld [vmem:[%s5 + $0x138] sm:$0xff]
      %v1744 = vld [vmem:[%s5 + $0x140] sm:$0xff]
      %v1745 = vld [vmem:[%s5 + $0x148] sm:$0xff]
      %v1746 = vld [vmem:[%s5 + $0x150] sm:$0xff]
      %v1747 = vld [vmem:[%s5 + $0x158] sm:$0xff]
      %v1748 = vld [vmem:[%s5 + $0x160] sm:$0xff]
      %v1749 = vld [vmem:[%s5 + $0x168] sm:$0xff]
      %v1750 = vld [vmem:[%s5 + $0x170] sm:$0xff]
      %v1751 = vld [vmem:[%s5 + $0x178] sm:$0xff]
      %v1752 = vld [vmem:[%s5 + $0x180] sm:$0xff]
      %v1753 = vld [vmem:[%s5 + $0x188] sm:$0xff]
      %v1754 = vld [vmem:[%s5 + $0x190] sm:$0xff]
      %v1755 = vld [vmem:[%s5 + $0x198] sm:$0xff]
      %v1756 = vld [vmem:[%s5 + $0x1a0] sm:$0xff]
      %v1757 = vld [vmem:[%s5 + $0x1a8] sm:$0xff]
      %v1758 = vld [vmem:[%s5 + $0x1b0] sm:$0xff]
      %v1759 = vld [vmem:[%s5 + $0x1b8] sm:$0xff]
      %v1760 = vld [vmem:[%s5 + $0x1c0] sm:$0xff]
      %v1761 = vld [vmem:[%s5 + $0x1c8] sm:$0xff]
      %v1762 = vld [vmem:[%s5 + $0x1d0] sm:$0xff]
      %v1763 = vld [vmem:[%s5 + $0x1d8] sm:$0xff]
      %v1764 = vld [vmem:[%s5 + $0x1e0] sm:$0xff]
      %v1765 = vld [vmem:[%s5 + $0x1e8] sm:$0xff]
      %v1766 = vld [vmem:[%s5 + $0x1f0] sm:$0xff]
      %v1767 = vld [vmem:[%s5 + $0x1f8] sm:$0xff]
      %v1768 = vld [vmem:[%s5 + $0x200] sm:$0xff]
      %v1769 = vld [vmem:[%s5 + $0x208] sm:$0xff]
      %v1770 = vld [vmem:[%s5 + $0x210] sm:$0xff]
      %v1771 = vld [vmem:[%s5 + $0x218] sm:$0xff]
      %v1772 = vld [vmem:[%s5 + $0x220] sm:$0xff]
      %v1773 = vld [vmem:[%s5 + $0x228] sm:$0xff]
      %v1774 = vld [vmem:[%s5 + $0x230] sm:$0xff]
      %v1775 = vld [vmem:[%s5 + $0x238] sm:$0xff]
      %s1776 = sld [smem:[#allocation2]]
      %v1777 = vstv %s1776
      %v1778 = vsel %vm1198, %v1701, 0
      %1780 = vmatprep.subr.mxu0 %v1705
      %1781 = vmatpush1.msra.mxu0 %v1704
      %1782 = vmatprep.subr.mxu0 %v1707
      %1783 = vmatpush1.msra.mxu0 %v1706
      %1784 = vmatprep.subr.mxu0 %v1709
      %1785 = vmatpush1.msra.mxu0 %v1708
      %1786 = vmatprep.subr.mxu0 %v1711
      %1787 = vmatpush1.msra.mxu0 %v1710
      %1788 = vmatprep.subr.mxu0 %v1713
      %1789 = vmatpush1.msra.mxu0 %v1712
      %1790 = vmatprep.subr.mxu0 %v1715
      %1791 = vmatpush1.msra.mxu0 %v1714
      %1792 = vmatprep.subr.mxu0 %v1717
      %1793 = vmatpush1.msra.mxu0 %v1716
      %1794 = vmatprep.subr.mxu0 %v1719
      %1795 = vmatpush1.msra.mxu0 %v1718
      %1796 = vmatprep.subr.mxu0 %v1721
      %1797 = vmatpush1.msra.mxu0 %v1720
      %1798 = vmatprep.subr.mxu0 %v1723
      %1799 = vmatpush1.msra.mxu0 %v1722
      %1800 = vmatprep.subr.mxu0 %v1725
      %1801 = vmatpush1.msra.mxu0 %v1724
      %1802 = vmatprep.subr.mxu0 %v1727
      %1803 = vmatpush1.msra.mxu0 %v1726
      %1804 = vmatprep.subr.mxu0 %v1729
      %1805 = vmatpush1.msra.mxu0 %v1728
      %1806 = vmatprep.subr.mxu0 %v1731
      %1807 = vmatpush1.msra.mxu0 %v1730
      %1808 = vmatprep.subr.mxu0 %v1733
      %1809 = vmatpush1.msra.mxu0 %v1732
      %1810 = vmatprep.subr.mxu0 %v1735
      %1811 = vmatpush1.msra.mxu0 %v1734
      %1812 = vmatprep.subr.mxu0 %v1737
      %1813 = vmatpush1.msra.mxu0 %v1736
      %1814 = vmatprep.subr.mxu0 %v1739
      %1815 = vmatpush1.msra.mxu0 %v1738
      %1816 = vmatprep.subr.mxu0 %v1741
      %1817 = vmatpush1.msra.mxu0 %v1740
      %1818 = vmatprep.subr.mxu0 %v1743
      %1819 = vmatpush1.msra.mxu0 %v1742
      %1820 = vmatprep.subr.mxu0 %v1745
      %1821 = vmatpush1.msra.mxu0 %v1744
      %1822 = vmatprep.subr.mxu0 %v1747
      %1823 = vmatpush1.msra.mxu0 %v1746
      %1824 = vmatprep.subr.mxu0 %v1749
      %1825 = vmatpush1.msra.mxu0 %v1748
      %1826 = vmatprep.subr.mxu0 %v1751
      %1827 = vmatpush1.msra.mxu0 %v1750
      %1828 = vmatprep.subr.mxu0 %v1753
      %1829 = vmatpush1.msra.mxu0 %v1752
      %1830 = vmatprep.subr.mxu0 %v1755
      %1831 = vmatpush1.msra.mxu0 %v1754
      %1832 = vmatprep.subr.mxu0 %v1757
      %1833 = vmatpush1.msra.mxu0 %v1756
      %1834 = vmatprep.subr.mxu0 %v1759
      %1835 = vmatpush1.msra.mxu0 %v1758
      %1836 = vmatprep.subr.mxu0 %v1761
      %1837 = vmatpush1.msra.mxu0 %v1760
      %1838 = vmatprep.subr.mxu0 %v1763
      %1839 = vmatpush1.msra.mxu0 %v1762
      %1840 = vmatprep.subr.mxu0 %v1765
      %1841 = vmatpush1.msra.mxu0 %v1764
      %1842 = vmatprep.subr.mxu0 %v1767
      %1843 = vmatpush1.msra.mxu0 %v1766
      %1844 = vmatprep.mubr.f32.mxu0 %v1703
      %1845 = vmatmul.mubr.f32.gmra.mrb[0].mxu0 %v1666
      %v1846 = vpop.f32.mrb[0].mxu0
      %v1847 = vadd.f32 %v1777, %v1846
      %v1848 = vpop.f32.mrb[0].mxu0
      %v1849 = vadd.f32 %v1777, %v1848
      %1850 = vdwg.mxu0
      %1851 = vmatprep.subr.mxu0 %v1769
      %1852 = vmatpush1.msra.mxu0 %v1768
      %1853 = vmatprep.subr.mxu0 %v1771
      %1854 = vmatpush1.msra.mxu0 %v1770
      %1855 = vmatprep.subr.mxu0 %v1773
      %1856 = vmatpush1.msra.mxu0 %v1772
      %1857 = vmatprep.subr.mxu0 %v1775
      %1858 = vmatpush1.msra.mxu0 %v1774
      %1859 = vmatprep.subr.mxu0 0.0
      %1860 = vmatpush1.msra.mxu0 0.0
      %1861 = vmatprep.subr.mxu0 0.0
      %1862 = vmatpush1.msra.mxu0 0.0
      %1863 = vmatprep.subr.mxu0 0.0
      %1864 = vmatpush1.msra.mxu0 0.0
      %1865 = vmatprep.subr.mxu0 0.0
      %1866 = vmatpush1.msra.mxu0 0.0
      %1867 = vmatprep.subr.mxu0 0.0
      %1868 = vmatpush1.msra.mxu0 0.0
      %1869 = vmatprep.subr.mxu0 0.0
      %1870 = vmatpush1.msra.mxu0 0.0
      %1871 = vmatprep.subr.mxu0 0.0
      %1872 = vmatpush1.msra.mxu0 0.0
      %1873 = vmatprep.subr.mxu0 0.0
      %1874 = vmatpush1.msra.mxu0 0.0
      %1875 = vmatprep.subr.mxu0 0.0
      %1876 = vmatpush1.msra.mxu0 0.0
      %1877 = vmatprep.subr.mxu0 0.0
      %1878 = vmatpush1.msra.mxu0 0.0
      %1879 = vmatprep.subr.mxu0 0.0
      %1880 = vmatpush1.msra.mxu0 0.0
      %1881 = vmatprep.subr.mxu0 0.0
      %1882 = vmatpush1.msra.mxu0 0.0
      %1883 = vmatprep.subr.mxu0 0.0
      %1884 = vmatpush1.msra.mxu0 0.0
      %1885 = vmatprep.subr.mxu0 0.0
      %1886 = vmatpush1.msra.mxu0 0.0
      %1887 = vmatprep.subr.mxu0 0.0
      %1888 = vmatpush1.msra.mxu0 0.0
      %1889 = vmatprep.subr.mxu0 0.0
      %1890 = vmatpush1.msra.mxu0 0.0
      %1891 = vmatprep.subr.mxu0 0.0
      %1892 = vmatpush1.msra.mxu0 0.0
      %1893 = vmatprep.subr.mxu0 0.0
      %1894 = vmatpush1.msra.mxu0 0.0
      %1895 = vmatprep.subr.mxu0 0.0
      %1896 = vmatpush1.msra.mxu0 0.0
      %1897 = vmatprep.subr.mxu0 0.0
      %1898 = vmatpush1.msra.mxu0 0.0
      %1899 = vmatprep.subr.mxu0 0.0
      %1900 = vmatpush1.msra.mxu0 0.0
      %1901 = vmatprep.subr.mxu0 0.0
      %1902 = vmatpush1.msra.mxu0 0.0
      %1903 = vmatprep.subr.mxu0 0.0
      %1904 = vmatpush1.msra.mxu0 0.0
      %1905 = vmatprep.subr.mxu0 0.0
      %1906 = vmatpush1.msra.mxu0 0.0
      %1907 = vmatprep.subr.mxu0 0.0
      %1908 = vmatpush1.msra.mxu0 0.0
      %1909 = vmatprep.subr.mxu0 0.0
      %1910 = vmatpush1.msra.mxu0 0.0
      %1911 = vmatprep.subr.mxu0 0.0
      %1912 = vmatpush1.msra.mxu0 0.0
      %1913 = vmatprep.subr.mxu0 0.0
      %1914 = vmatpush1.msra.mxu0 0.0
      %1915 = vmatprep.mubr.f32.mxu0 0.0
      %1916 = vmatmul.mubr.f32.gmra.mrb[0].mxu0 %v1778
      %v1917 = vpop.f32.mrb[0].mxu0
      %v1918 = vadd.f32 %v1847, %v1917
      %v1919 = vpop.f32.mrb[0].mxu0
      %v1920 = vadd.f32 %v1849, %v1919
      %1921 = vdwg.mxu0
      %v1922 = vxor.u32 %v1918, 2147483648
      %v1923 = vxor.u32 %v1920, 2147483648
      %v1924 = vmul.f32 %v1922, 1.442695
      %v1925 = vpow.pop %v1924
      %v1926 = vmul.f32 %v1923, 1.442695
      %v1927 = vpow.pop %v1926
      %v1928 = vadd.f32 %v1925, 1.0
      %v1929 = vadd.f32 %v1927, 1.0
      %v1930 = vrcp.pop %v1928
      %v1931 = vmul.f32 1.0, %v1930
      %v1932 = vrcp.pop %v1929
      %v1933 = vmul.f32 1.0, %v1932
      %v1934 = vld [vmem:[%s6] sm:$0xff]
      %v1935 = vld [vmem:[%s6 + $0x8] sm:$0xff]
      %v1936 = vlaneseq
      %v1937 = vshrl.u32 %v1936, 7
      %v1938 = vsub.s32 0, %v1937
      %v1939 = vrot.slane %v1659, %v1938
      %v1940 = vmul.f32 %v1934, %v1939
      %v1941 = vmul.f32 %v1935, %v1939
      %v1943 = vsel %vm367, %v1940, 0
      %v1946 = vsel %vm367, %v1941, 0
      %1948 = vmatprep.subr.mxu0 %v348
      %1949 = vmatpush1.msra.mxu0 %v347
      %1950 = vmatprep.subr.mxu0 %v350
      %1951 = vmatpush1.msra.mxu0 %v349
      %1952 = vmatprep.subr.mxu0 0.0
      %1953 = vmatpush1.msra.mxu0 0.0
      %1954 = vmatprep.subr.mxu0 0.0
      %1955 = vmatpush1.msra.mxu0 0.0
      %1956 = vmatprep.subr.mxu0 0.0
      %1957 = vmatpush1.msra.mxu0 0.0
      %1958 = vmatprep.subr.mxu0 0.0
      %1959 = vmatpush1.msra.mxu0 0.0
      %1960 = vmatprep.subr.mxu0 0.0
      %1961 = vmatpush1.msra.mxu0 0.0
      %1962 = vmatprep.subr.mxu0 0.0
      %1963 = vmatpush1.msra.mxu0 0.0
      %1964 = vmatprep.subr.mxu0 0.0
      %1965 = vmatpush1.msra.mxu0 0.0
      %1966 = vmatprep.subr.mxu0 0.0
      %1967 = vmatpush1.msra.mxu0 0.0
      %1968 = vmatprep.subr.mxu0 0.0
      %1969 = vmatpush1.msra.mxu0 0.0
      %1970 = vmatprep.subr.mxu0 0.0
      %1971 = vmatpush1.msra.mxu0 0.0
      %1972 = vmatprep.subr.mxu0 0.0
      %1973 = vmatpush1.msra.mxu0 0.0
      %1974 = vmatprep.subr.mxu0 0.0
      %1975 = vmatpush1.msra.mxu0 0.0
      %1976 = vmatprep.subr.mxu0 0.0
      %1977 = vmatpush1.msra.mxu0 0.0
      %1978 = vmatprep.subr.mxu0 0.0
      %1979 = vmatpush1.msra.mxu0 0.0
      %1980 = vmatprep.subr.mxu0 0.0
      %1981 = vmatpush1.msra.mxu0 0.0
      %1982 = vmatprep.subr.mxu0 0.0
      %1983 = vmatpush1.msra.mxu0 0.0
      %1984 = vmatprep.subr.mxu0 0.0
      %1985 = vmatpush1.msra.mxu0 0.0
      %1986 = vmatprep.subr.mxu0 0.0
      %1987 = vmatpush1.msra.mxu0 0.0
      %1988 = vmatprep.subr.mxu0 0.0
      %1989 = vmatpush1.msra.mxu0 0.0
      %1990 = vmatprep.subr.mxu0 0.0
      %1991 = vmatpush1.msra.mxu0 0.0
      %1992 = vmatprep.subr.mxu0 0.0
      %1993 = vmatpush1.msra.mxu0 0.0
      %1994 = vmatprep.subr.mxu0 0.0
      %1995 = vmatpush1.msra.mxu0 0.0
      %1996 = vmatprep.subr.mxu0 0.0
      %1997 = vmatpush1.msra.mxu0 0.0
      %1998 = vmatprep.subr.mxu0 0.0
      %1999 = vmatpush1.msra.mxu0 0.0
      %2000 = vmatprep.subr.mxu0 0.0
      %2001 = vmatpush1.msra.mxu0 0.0
      %2002 = vmatprep.subr.mxu0 0.0
      %2003 = vmatpush1.msra.mxu0 0.0
      %2004 = vmatprep.subr.mxu0 0.0
      %2005 = vmatpush1.msra.mxu0 0.0
      %2006 = vmatprep.subr.mxu0 0.0
      %2007 = vmatpush1.msra.mxu0 0.0
      %2008 = vmatprep.subr.mxu0 0.0
      %2009 = vmatpush1.msra.mxu0 0.0
      %2010 = vmatprep.subr.mxu0 0.0
      %2011 = vmatpush1.msra.mxu0 0.0
      %2012 = vmatprep.mubr.f32.mxu0 0.0
      %2013 = vmatmul.mubr.f32.gmra.mrb[0].mxu0 %v1943
      %v2014 = vpop.f32.mrb[0].mxu0
      %v2015 = vadd.f32 0.0, %v2014
      %v2016 = vpop.f32.mrb[0].mxu0
      %v2017 = vadd.f32 0.0, %v2016
      %2018 = vmatprep.mubr.f32.mxu0 0.0
      %2019 = vmatmul.mubr.f32.gmra.mrb[0].mxu0 %v1946
      %v2020 = vpop.f32.mrb[0].mxu0
      %v2021 = vadd.f32 0.0, %v2020
      %v2022 = vpop.f32.mrb[0].mxu0
      %v2023 = vadd.f32 0.0, %v2022
      %2024 = vdwg.mxu0
      %v2025 = vlaneseq
      %v2026 = vshrl.u32 %v2025, 7
      %v2027 = vsub.s32 0, %v2026
      %v2028 = vrot.slane %v1931, %v2027
      %v2029 = vlaneseq
      %v2030 = vshrl.u32 %v2029, 7
      %v2031 = vsub.s32 0, %v2030
      %v2032 = vrot.slane %v1933, %v2031
      %v2033 = vmul.f32 %v347, %v2028
      %v2034 = vmul.f32 %v348, %v2032
      %v2035 = vmul.f32 %v349, %v2028
      %v2036 = vmul.f32 %v350, %v2032
      %v2037 = vadd.f32 %v2033, %v2015
      %v2038 = vadd.f32 %v2034, %v2017
      %v2039 = vadd.f32 %v2035, %v2021
      %v2040 = vadd.f32 %v2036, %v2023
      %v2041 = vmul.f32 %v2037, 0.5
      %v2042 = vmul.f32 %v2038, 0.5
      %v2043 = vmul.f32 %v2039, 0.5
      %v2044 = vmul.f32 %v2040, 0.5
      %2045 = vst [vmem:[%s346] sm:$0xff] %v2041
      %2046 = vst.msk [vmem:[%s346 + $0x8] sm:$0xff] %vm367, %v2042
      %2047 = vst [vmem:[%s346 + $0x10] sm:$0xff] %v2043
      %2048 = vst.msk [vmem:[%s346 + $0x18] sm:$0xff] %vm367, %v2044
      %v2049 = vsub.f32 %v347, %v2041
      %v2050 = vsub.f32 %v348, %v2042
      %v2051 = vsub.f32 %v349, %v2043
      %v2052 = vsub.f32 %v350, %v2044
      %2053 = vst [vmem:[%s341] sm:$0xff] %v2049
      %2054 = vst.msk [vmem:[%s341 + $0x8] sm:$0xff] %vm367, %v2050
      %2055 = vst [vmem:[%s341 + $0x10] sm:$0xff] %v2051
      %2056 = vst.msk [vmem:[%s341 + $0x18] sm:$0xff] %vm367, %v2052
      %p2057 = scmp.lt.s32.totalorder %s22, 1
      %s2058 = scalar_select %p2057, %s22, 1
      %s2059 = smul.addr %s2058, 4
      %s2060 = smul.addr %s2059, 8
      %s2061 = scalar_lea.vmem %s8, %s2060
      %p2062 = scmp.lt.s32.totalorder %s22, 1
      %s2063 = scalar_select %p2062, %s22, 1
      %s2064 = smul.addr %s2063, 4
      %s2065 = smul.addr %s2064, 8
      %s2066 = scalar_lea.vmem %s9, %s2065
      // Predicated region
      $region53: #{attention_forward.1} parent=51 // pred_check
        %p2067 = pneg %p213
      $region54: #{attention_forward.1} parent=51 // pred_check_branch
        %2069 = sbr.rel (%p2067) target = $region56
      $region55: #{attention_forward.1} parent=51 // pred_region
        _
      $region56: #{attention_forward.1} parent=51 // pred_fallthru
        _
      // Predicated region
      $region57: #{attention_forward.1} parent=51 // pred_check
        %p2070 = pneg %p239
      $region58: #{attention_forward.1} parent=51 // pred_check_branch
        %2072 = sbr.rel (%p2070) target = $region60
      $region59: #{attention_forward.1} parent=51 // pred_region
        _
      $region60: #{attention_forward.1} parent=51 // pred_fallthru
        _
    $region52: #{attention_forward.1} parent=5 // pred_fallthru
      _
    %p2073 = scmp.le.s32.totalorder 2, %s17
    // Predicated region
    $region61: #{attention_forward.1} parent=5 // pred_check
      %p2074 = pneg %p2073
    $region62: #{attention_forward.1} parent=5 // pred_check_branch
      %2076 = sbr.rel (%p2074) target = $region64
    $region63: #{attention_forward.1} parent=5 // pred_region
      %s2077 = ssub.s32 %s17, 2
      // Predicated region
      $region65: #{attention_forward.1} parent=63 // pred_check
        %p2078 = pneg %p219
      $region66: #{attention_forward.1} parent=63 // pred_check_branch
        %2080 = sbr.rel (%p2078) target = $region68
      $region67: #{attention_forward.1} parent=63 // pred_region
        %p2081 = scmp.lt.s32.totalorder %s23, 1
        %s2082 = scalar_select %p2081, %s23, 1
        %s2083 = smul.addr %s2082, 4
        %s2084 = smul.addr %s2083, 8
        %s2085 = scalar_lea.vmem %s8, %s2084
      $region68: #{attention_forward.1} parent=63 // pred_fallthru
        _
      // Predicated region
      $region69: #{attention_forward.1} parent=63 // pred_check
        %p2086 = pneg %p245
      $region70: #{attention_forward.1} parent=63 // pred_check_branch
        %2088 = sbr.rel (%p2086) target = $region72
      $region71: #{attention_forward.1} parent=63 // pred_region
        %p2089 = scmp.lt.s32.totalorder %s23, 1
        %s2090 = scalar_select %p2089, %s23, 1
        %s2091 = smul.addr %s2090, 4
        %s2092 = smul.addr %s2091, 8
        %s2093 = scalar_lea.vmem %s9, %s2092
      $region72: #{attention_forward.1} parent=63 // pred_fallthru
        _
    $region64: #{attention_forward.1} parent=5 // pred_fallthru
      _
  $region6: #{attention_forward.1} parent=0 // loop_footer
    %s21 = sadd.s32 1, %s17
  $region7: #{attention_forward.1} parent=0 // loop_footer_branch
    %16 = sbr.rel target = $region3
  $region8: #{attention_forward.1} parent=0 // loop_exit
    _

</llo_original>
